<compile_context>
chip_gen: v6e
topology: v6e:2x2x1
jax: 0.10.0
libtpu: 0.0.40
codegen_flags: <defaults>
</compile_context>

<pallas_src>
import functools

import jax
import jax.numpy as jnp
from jax import lax
from jax.experimental import pallas as pl
from jax.experimental.pallas import tpu as pltpu


def _tpu_vmem_capacity_bytes():
    try:
        return int(pltpu.get_tpu_info().vmem_capacity_bytes)
    except Exception:
        return 128 * 1024 * 1024


_VMEM_CAP = _tpu_vmem_capacity_bytes()
# 64 MiB scoped VMEM is fine on v5e/v6e (128 MiB physical); on v7x (64 MiB per
# TensorCore) leave headroom for Mosaic internal scratch -> ~70% of capacity.
_VMEM_LIMIT = min(64 * 1024 * 1024, _VMEM_CAP * 7 // 10)


def _ceil_to(a, b):
    return -(-a // b) * b


def _default_block_rows(n):
    """Row-block size for the mem-bound adjacency streams, sized from VMEM."""
    n8 = _ceil_to(max(n, 1), 8)
    # Per dst-row cost inside kernels 2/3: double-buffered bf16 adjacency tile
    # (2 * N * 2B) plus ~2 live f32 [tm, N] softmax temporaries (8B) -> ~12 B/pair.
    per_row = 12 * n8
    tm = max(8, (_VMEM_LIMIT // 2) // per_row)
    return min(512, n8, (tm // 8) * 8)


def _cparams(sem):
    return pltpu.CompilerParams(dimension_semantics=(sem,),
                                vmem_limit_bytes=_VMEM_LIMIT)


def _resident(shape):
    """Constant-index input: request a single VMEM buffer (no double-buffer)."""
    ndim = len(shape)
    idx = lambda i: (0,) * ndim
    try:
        return pl.BlockSpec(shape, idx, pipeline_mode=pl.Buffered(1))
    except TypeError:  # older BlockSpec signature without pipeline_mode
        return pl.BlockSpec(shape, idx)


# ---------------------------------------------------------------------------
# Kernel 1: shared projection + attention coefficients in one MXU pass.
#   w_aug = [w_gat | w_gat @ A_src^T | w_gat @ A_dst^T]  ->  y = [xp | a_src | a_dst]
# ---------------------------------------------------------------------------
def _proj_kernel(x_ref, w_ref, xp_ref, al_ref):
    hc = xp_ref.shape[1]
    y = jnp.dot(x_ref[...], w_ref[...], preferred_element_type=jnp.float32)
    xp_ref[...] = y[:, :hc].astype(jnp.bfloat16)   # bf16 xp: half HBM + VMEM
    al_ref[...] = y[:, hc:]                        # [tm, 2H] f32 coefficients


# ---------------------------------------------------------------------------
# Kernel 2: GATConv over destination row blocks ("parallel").
#   xp_ref   : [N, H*C] bf16, resident (sliced per head, never fully loaded)
#   asrc_ref : [H, N]   f32, resident (alpha_src transposed, lane-dense rows)
#   adst_ref : [tm, H]  f32, this block's alpha_dst
#   adj_ref  : [tm, N]  bf16 adjacency rows WITH self loops
# Also emits sr = [gat@w_rel | gat@w_root] for the GraphConv score kernel.
# ---------------------------------------------------------------------------
def _gat_kernel(xp_ref, asrc_ref, adst_ref, b_ref, w2_ref, adj_ref,
                out_ref, sr_ref):
    nh = asrc_ref.shape[0]
    c = xp_ref.shape[1] // nh

    adj = adj_ref[...]                                   # [tm, N] bf16 (0/1)
    edge = adj > 0                                       # bool mask (self loops incl.)
    adst = adst_ref[...]                                 # [tm, H]

    heads = []
    for h in range(nh):                                  # small static head loop
        e = adst[:, h:h + 1] + asrc_ref[h:h + 1, :]      # [tm, N]
        e = jnp.where(e > 0, e, jnp.float32(0.2) * e)    # LeakyReLU(0.2)
        e = jnp.where(edge, e, jnp.float32(-1e30))       # mask BEFORE the row max
        m = jnp.max(e, axis=1, keepdims=True)            # attained at an edge
        p = jnp.exp(e - m)                               # non-edges underflow to 0
        # Every row has a self loop and the max is at an edge -> denom >= 1,
        # so the approx reciprocal is safe without an epsilon guard.
        denom = jnp.sum(p, axis=1, keepdims=True)
        attn = p * pl.reciprocal(denom, approx=True)
        heads.append(jnp.dot(attn.astype(jnp.bfloat16),
                             xp_ref[:, h * c:(h + 1) * c],
                             preferred_element_type=jnp.float32))   # [tm, C]

    out = jnp.concatenate(heads, axis=1) + b_ref[...]    # [tm, HC], single store
    out_ref[...] = out
    # GraphConv ingredients: srel = gat @ w_rel, root = gat @ w_root  (f32)
    sr_ref[...] = jnp.dot(out, w2_ref[...], preferred_element_type=jnp.float32)


# ---------------------------------------------------------------------------
# Kernel 3: GraphConv score, row-parallel adjacency stream.
#   score = adj @ (gat @ w_rel) + gat @ w_root
# adj_ref includes self loops, so the diagonal contribution is subtracted.
# (GraphConv's bias is dropped: the per-graph softmax is shift invariant.)
# ---------------------------------------------------------------------------
def _score_kernel(sr_ref, adj_ref, score_ref):
    tm = adj_ref.shape[0]
    row0 = pl.multiple_of(pl.program_id(0) * tm, tm)
    srel = sr_ref[:, 0:1]                                 # [N, 1] f32 (tiny resident)
    nbr = jnp.dot(adj_ref[...], srel.astype(jnp.bfloat16),
                  preferred_element_type=jnp.float32)     # (adj + I) @ srel
    sr_blk = sr_ref[pl.ds(row0, tm), :]                   # [tm, 2]
    score_ref[...] = nbr - sr_blk[:, 0:1] + sr_blk[:, 1:2]


# ---------------------------------------------------------------------------
# Kernel 4: per-graph softmax (SAGPooling min_score=-1) + global_add_pool.
# Tiny finalize: only touches O(N*(HC+G)) data, single grid point.
# ---------------------------------------------------------------------------
def _finalize_kernel(gat_ref, mask_ref, score_ref, emb_ref):
    mask = mask_ref[...]                                            # [N, G] one-hot
    s = jnp.where(mask > 0, score_ref[...], jnp.float32(-1e30))     # [N, G]
    m_g = jnp.max(s, axis=0, keepdims=True)                         # [1, G]
    p = jnp.exp(s - m_g) * mask
    l = jnp.maximum(jnp.sum(p, axis=0, keepdims=True), jnp.float32(1e-9))
    soft = p / l                                                    # per-graph softmax
    att_x = gat_ref[...] * jnp.sum(soft, axis=1, keepdims=True)     # x[perm]*score[perm]
    # global_add_pool: contract the node axis of the one-hot graph mask (f32).
    emb_ref[...] = lax.dot_general(mask, att_x, (((0,), (0,)), ((), ())),
                                   preferred_element_type=jnp.float32)


# ---------------------------------------------------------------------------
# Wrapper
# ---------------------------------------------------------------------------
def _head_blockdiag(att):
    """[H, C] per-head vectors -> [H, H*C] block layout."""
    nh, c = att.shape
    out = jnp.zeros((nh, nh * c), att.dtype)
    for h in range(nh):
        out = out.at[h, h * c:(h + 1) * c].set(att[h])
    return out


@functools.partial(jax.jit, static_argnames=("block_rows",))
def ssi_ddi_block(x, adj, mask_ng, params, *, block_rows=None):
    n, f_in = x.shape
    g = mask_ng.shape[1]
    nh, c = params["att_src"].shape
    hc = nh * c

    tm = block_rows if block_rows is not None else _default_block_rows(n)
    assert tm % 8 == 0, "row block must be a multiple of 8 sublanes"
    np_ = _ceil_to(n, tm)
    pad = np_ - n
    if pad:  # padded nodes have no edges and zero graph mask -> no effect
        x = jnp.pad(x, ((0, pad), (0, 0)))
        adj = jnp.pad(adj, ((0, pad), (0, pad)))
        mask_ng = jnp.pad(mask_ng, ((0, pad), (0, 0)))

    # Single adjacency, self loops added here (bf16 is exact for 0/1 and halves
    # HBM traffic).  The score kernel subtracts the diagonal term so GraphConv
    # still aggregates neighbours only.
    adj_sl = (adj + jnp.eye(np_, dtype=adj.dtype)).astype(jnp.bfloat16)

    a_src_bd = _head_blockdiag(params["att_src"])        # [H, HC]
    a_dst_bd = _head_blockdiag(params["att_dst"])        # [H, HC]
    # Fold attention coefficients into the projection.
    w_aug = jnp.concatenate([params["w_gat"],
                             params["w_gat"] @ a_src_bd.T,
                             params["w_gat"] @ a_dst_bd.T], axis=1)    # [F_in, HC+2H]
    w2 = jnp.concatenate([params["w_rel"], params["w_root"]], axis=1)  # [HC, 2]

    nblk = np_ // tm

    # 1) projection + attention coefficients (row-parallel)
    xp_bf, alphas = pl.pallas_call(
        _proj_kernel,
        out_shape=(jax.ShapeDtypeStruct((np_, hc), jnp.bfloat16),
                   jax.ShapeDtypeStruct((np_, 2 * nh), jnp.float32)),
        grid=(nblk,),
        in_specs=[pl.BlockSpec((tm, f_in), lambda i: (i, 0)),
                  _resident((f_in, hc + 2 * nh))],
        out_specs=(pl.BlockSpec((tm, hc), lambda i: (i, 0)),
                   pl.BlockSpec((tm, 2 * nh), lambda i: (i, 0))),
        compiler_params=_cparams("parallel"),
    )(x, w_aug)

    # Tiny layout plumbing between calls: alpha_src needs to sit on the lane axis.
    a_src_t = alphas[:, :nh].T                            # [H, N] f32
    a_dst = alphas[:, nh:]                                # [N, H] f32

    # 2) GAT attention + aggregation + score vectors (row-parallel)
    gat, sr = pl.pallas_call(
        _gat_kernel,
        out_shape=(jax.ShapeDtypeStruct((np_, hc), jnp.float32),
                   jax.ShapeDtypeStruct((np_, 2), jnp.float32)),
        grid=(nblk,),
        in_specs=[_resident((np_, hc)),                    # xp (bf16, single buffer)
                  _resident((nh, np_)),                    # alpha_src^T
                  pl.BlockSpec((tm, nh), lambda i: (i, 0)),  # alpha_dst rows
                  _resident((1, hc)),                      # GAT bias
                  _resident((hc, 2)),                      # [w_rel | w_root]
                  pl.BlockSpec((tm, np_), lambda i: (i, 0))],  # adjacency rows (bf16)
        out_specs=(pl.BlockSpec((tm, hc), lambda i: (i, 0)),
                   pl.BlockSpec((tm, 2), lambda i: (i, 0))),
        compiler_params=_cparams("parallel"),
    )(xp_bf, a_src_t, a_dst, params["b_gat"], w2, adj_sl)

    # 3) GraphConv score: pure adjacency stream, row-parallel (both TCs on v7x)
    score = pl.pallas_call(
        _score_kernel,
        out_shape=jax.ShapeDtypeStruct((np_, 1), jnp.float32),
        grid=(nblk,),
        in_specs=[_resident((np_, 2)),
                  pl.BlockSpec((tm, np_), lambda i: (i, 0))],
        out_specs=pl.BlockSpec((tm, 1), lambda i: (i, 0)),
        compiler_params=_cparams("parallel"),
    )(sr, adj_sl)

    # 4) per-graph softmax + global_add_pool
    emb = pl.pallas_call(
        _finalize_kernel,
        out_shape=jax.ShapeDtypeStruct((g, hc), jnp.float32),
        grid=(1,),
        in_specs=[pl.BlockSpec((np_, hc), lambda i: (0, 0)),
                  pl.BlockSpec((np_, g), lambda i: (0, 0)),
                  pl.BlockSpec((np_, 1), lambda i: (0, 0))],
        out_specs=pl.BlockSpec((g, hc), lambda i: (0, 0)),
        compiler_params=_cparams("arbitrary"),
    )(gat, mask_ng, score)

    return gat[:n], emb


# ---------------------------------------------------------------------------
# Pure-JAX f32 reference (same math, no Pallas) for the correctness check
# ---------------------------------------------------------------------------
def ssi_ddi_reference(x, adj, mask_ng, params):
    nh, c = params["att_src"].shape
    n = x.shape[0]
    adj_sl = adj + jnp.eye(n, dtype=adj.dtype)
    x_proj = x @ params["w_gat"]
    heads = []
    for h in range(nh):
        xp_h = x_proj[:, h * c:(h + 1) * c]
        a_s = (xp_h * params["att_src"][h]).sum(-1)
        a_d = (xp_h * params["att_dst"][h]).sum(-1)
        e = a_d[:, None] + a_s[None, :]
        e = jnp.where(e > 0, e, 0.2 * e)
        e = jnp.where(adj_sl > 0, e, -1e30)
        e = e - e.max(1, keepdims=True)
        p = jnp.exp(e) * adj_sl
        attn = p / p.sum(1, keepdims=True)
        heads.append(attn @ xp_h)
    gat_out = jnp.concatenate(heads, 1) + params["b_gat"]
    nbr = adj @ gat_out
    score = nbr @ params["w_rel"] + gat_out @ params["w_root"] + params["b_gc"]
    s = jnp.where(mask_ng > 0, score, -1e30)
    p = jnp.exp(s - s.max(0, keepdims=True)) * mask_ng
    soft = p / p.sum(0, keepdims=True)
    att_x = gat_out * soft.sum(1, keepdims=True)
    emb = mask_ng.T @ att_x
    return gat_out, emb


# ---------------------------------------------------------------------------
# Main
# ---------------------------------------------------------------------------
if __name__ == "__main__":
    # n_heads=2, in_features=32, head_out_feats=16 -> GAT output dim 32.
    # N=32 nodes in G=2 ring graphs of 16 nodes; row-block size 8 -> 4 blocks.
    N, F_IN, H, C, G = 32, 32, 2, 16, 2
    HC = H * C

    key = jax.random.PRNGKey(0)
    keys = jax.random.split(key, 8)

    x = jax.random.normal(keys[0], (N, F_IN), dtype=jnp.float32)

    adj = jnp.zeros((N, N), dtype=jnp.float32)
    n_g = N // G
    for gidx in range(G):
        base = gidx * n_g
        for i in range(n_g):
            src, dst = base + i, base + (i + 1) % n_g
            adj = adj.at[dst, src].set(1.0)
            adj = adj.at[src, dst].set(1.0)

    batch = jnp.repeat(jnp.arange(G, dtype=jnp.int32), n_g)
    mask_ng = jax.nn.one_hot(batch, G, dtype=jnp.float32)   # [N, G]

    params = {
        "w_gat":   0.1 * jax.random.normal(keys[1], (F_IN, HC), jnp.float32),
        "att_src": 0.1 * jax.random.normal(keys[2], (H, C), jnp.float32),
        "att_dst": 0.1 * jax.random.normal(keys[3], (H, C), jnp.float32),
        "b_gat":   0.1 * jax.random.normal(keys[4], (1, HC), jnp.float32),
        "w_rel":   0.1 * jax.random.normal(keys[5], (HC, 1), jnp.float32),
        "w_root":  0.1 * jax.random.normal(keys[6], (HC, 1), jnp.float32),
        "b_gc":    0.1 * jax.random.normal(keys[7], (1, 1), jnp.float32),
    }

    gat_out, emb = ssi_ddi_block(x, adj, mask_ng, params, block_rows=8)
    jax.block_until_ready((gat_out, emb))

    ref_gat, ref_emb = ssi_ddi_reference(x, adj, mask_ng, params)
    # Tolerance reflects bf16 matmul operands (attention aggregation, adj@srel)
    # and approx reciprocals; observed error is ~1e-3.
    assert gat_out.shape == ref_gat.shape and emb.shape == ref_emb.shape
    assert jnp.allclose(gat_out, ref_gat, atol=2e-2, rtol=2e-2)
    assert jnp.allclose(emb, ref_emb, atol=2e-2, rtol=2e-2)

    print("KERNEL_OK")
</pallas_src>

<mosaic_0001>
module attributes {stable_mosaic.version = 11 : i64} {
  func.func @_proj_kernel(%arg0: i32, %arg1: memref<8x32xf32, #tpu.memory_space<vmem>>, %arg2: memref<32x36xf32, #tpu.memory_space<vmem>>, %arg3: memref<8x32xbf16, #tpu.memory_space<vmem>>, %arg4: memref<8x4xf32, #tpu.memory_space<vmem>>) attributes {dimension_semantics = [#tpu.dimension_semantics<parallel>], iteration_bounds = array<i64: 4>, scalar_prefetch = 0 : i64, scratch_operands = 0 : i64, tpu.core_type = #tpu.core_type<tc>, window_params = [{transform_indices = @transform_0, window_bounds = array<i64: 8, 32>}, {pipeline_mode = #tpu.pipeline_mode<synchronous>, transform_indices = @transform_1, window_bounds = array<i64: 32, 36>}, {transform_indices = @transform_2, window_bounds = array<i64: 8, 32>}, {transform_indices = @transform_3, window_bounds = array<i64: 8, 4>}]} {
    %c0 = arith.constant 0 : index
    %c0_0 = arith.constant 0 : index
    %0 = vector.load %arg1[%c0, %c0_0] : memref<8x32xf32, #tpu.memory_space<vmem>>, vector<8x32xf32>
    %c0_1 = arith.constant 0 : index
    %c0_2 = arith.constant 0 : index
    %1 = vector.load %arg2[%c0_1, %c0_2] : memref<32x36xf32, #tpu.memory_space<vmem>>, vector<32x36xf32>
    %cst = arith.constant dense<0.000000e+00> : vector<8x36xf32>
    %2 = tpu.matmul %0, %1, %cst {dimension_numbers = #tpu.dot_dimension_numbers<[1], [0], [0], [1], [0, 0, 1, 1], [], []>} : vector<8x32xf32>, vector<32x36xf32>, vector<8x36xf32> -> vector<8x36xf32>
    %3 = vector.extract_strided_slice %2 {offsets = [0, 0], sizes = [8, 32], strides = [1, 1]} : vector<8x36xf32> to vector<8x32xf32>
    %4 = arith.truncf %3 : vector<8x32xf32> to vector<8x32xbf16>
    %c0_3 = arith.constant 0 : index
    %c0_4 = arith.constant 0 : index
    %5 = vector.load %arg3[%c0_3, %c0_4] : memref<8x32xbf16, #tpu.memory_space<vmem>>, vector<8x32xbf16>
    tpu.vector_store %arg3[%c0_3, %c0_4], %4 {strides = array<i32>} : memref<8x32xbf16, #tpu.memory_space<vmem>>, vector<8x32xbf16>,
    %6 = vector.extract_strided_slice %2 {offsets = [0, 32], sizes = [8, 4], strides = [1, 1]} : vector<8x36xf32> to vector<8x4xf32>
    %c0_5 = arith.constant 0 : index
    %c0_6 = arith.constant 0 : index
    %7 = vector.load %arg4[%c0_5, %c0_6] : memref<8x4xf32, #tpu.memory_space<vmem>>, vector<8x4xf32>
    tpu.vector_store %arg4[%c0_5, %c0_6], %6 {strides = array<i32>} : memref<8x4xf32, #tpu.memory_space<vmem>>, vector<8x4xf32>,
    return
  }
  func.func @transform_0(%arg0: i32) -> (i32, i32) {
    %c0_i32 = arith.constant 0 : i32
    %c0_i32_0 = arith.constant 0 : i32
    return %arg0, %c0_i32 : i32, i32
  }
  func.func @transform_1(%arg0: i32) -> (i32, i32) {
    %c0_i32 = arith.constant 0 : i32
    %c0_i32_0 = arith.constant 0 : i32
    %c0_i32_1 = arith.constant 0 : i32
    return %c0_i32, %c0_i32_0 : i32, i32
  }
  func.func @transform_2(%arg0: i32) -> (i32, i32) {
    %c0_i32 = arith.constant 0 : i32
    %c0_i32_0 = arith.constant 0 : i32
    return %arg0, %c0_i32 : i32, i32
  }
  func.func @transform_3(%arg0: i32) -> (i32, i32) {
    %c0_i32 = arith.constant 0 : i32
    %c0_i32_0 = arith.constant 0 : i32
    return %arg0, %c0_i32 : i32, i32
  }
}

module attributes {stable_mosaic.version = 11 : i64} {
  func.func @_score_kernel(%arg0: i32, %arg1: memref<32x2xf32, #tpu.memory_space<vmem>>, %arg2: memref<8x32xbf16, #tpu.memory_space<vmem>>, %arg3: memref<8x1xf32, #tpu.memory_space<vmem>>) attributes {dimension_semantics = [#tpu.dimension_semantics<parallel>], iteration_bounds = array<i64: 4>, scalar_prefetch = 0 : i64, scratch_operands = 0 : i64, tpu.core_type = #tpu.core_type<tc>, window_params = [{pipeline_mode = #tpu.pipeline_mode<synchronous>, transform_indices = @transform_0, window_bounds = array<i64: 32, 2>}, {transform_indices = @transform_1, window_bounds = array<i64: 8, 32>}, {transform_indices = @transform_2, window_bounds = array<i64: 8, 1>}]} {
    %c8_i32 = arith.constant 8 : i32
    %0 = arith.muli %arg0, %c8_i32 : i32
    %1 = tpu.assume_multiple %0, 8 : i32
    %c0 = arith.constant 0 : index
    %c0_0 = arith.constant 0 : index
    %2 = vector.load %arg1[%c0, %c0_0] : memref<32x2xf32, #tpu.memory_space<vmem>>, vector<32x1xf32>
    %c0_1 = arith.constant 0 : index
    %c0_2 = arith.constant 0 : index
    %3 = vector.load %arg2[%c0_1, %c0_2] : memref<8x32xbf16, #tpu.memory_space<vmem>>, vector<8x32xbf16>
    %4 = arith.truncf %2 : vector<32x1xf32> to vector<32x1xbf16>
    %cst = arith.constant dense<0.000000e+00> : vector<8x1xf32>
    %5 = tpu.matmul %3, %4, %cst {dimension_numbers = #tpu.dot_dimension_numbers<[1], [0], [0], [1], [0, 0, 1, 1], [], []>} : vector<8x32xbf16>, vector<32x1xbf16>, vector<8x1xf32> -> vector<8x1xf32>
    %6 = arith.index_cast %1 : i32 to index
    %c0_3 = arith.constant 0 : index
    %7 = vector.load %arg1[%6, %c0_3] : memref<32x2xf32, #tpu.memory_space<vmem>>, vector<8x2xf32>
    %8 = vector.extract_strided_slice %7 {offsets = [0, 0], sizes = [8, 1], strides = [1, 1]} : vector<8x2xf32> to vector<8x1xf32>
    %9 = arith.subf %5, %8 : vector<8x1xf32>
    %10 = vector.extract_strided_slice %7 {offsets = [0, 1], sizes = [8, 1], strides = [1, 1]} : vector<8x2xf32> to vector<8x1xf32>
    %11 = arith.addf %9, %10 : vector<8x1xf32>
    %c0_4 = arith.constant 0 : index
    %c0_5 = arith.constant 0 : index
    %12 = vector.load %arg3[%c0_4, %c0_5] : memref<8x1xf32, #tpu.memory_space<vmem>>, vector<8x1xf32>
    tpu.vector_store %arg3[%c0_4, %c0_5], %11 {strides = array<i32>} : memref<8x1xf32, #tpu.memory_space<vmem>>, vector<8x1xf32>,
    return
  }
  func.func @transform_0(%arg0: i32) -> (i32, i32) {
    %c0_i32 = arith.constant 0 : i32
    %c0_i32_0 = arith.constant 0 : i32
    %c0_i32_1 = arith.constant 0 : i32
    return %c0_i32, %c0_i32_0 : i32, i32
  }
  func.func @transform_1(%arg0: i32) -> (i32, i32) {
    %c0_i32 = arith.constant 0 : i32
    %c0_i32_0 = arith.constant 0 : i32
    return %arg0, %c0_i32 : i32, i32
  }
  func.func @transform_2(%arg0: i32) -> (i32, i32) {
    %c0_i32 = arith.constant 0 : i32
    %c0_i32_0 = arith.constant 0 : i32
    return %arg0, %c0_i32 : i32, i32
  }
}

module attributes {stable_mosaic.version = 11 : i64} {
  func.func @_gat_kernel(%arg0: i32, %arg1: memref<32x32xbf16, #tpu.memory_space<vmem>>, %arg2: memref<2x32xf32, #tpu.memory_space<vmem>>, %arg3: memref<8x2xf32, #tpu.memory_space<vmem>>, %arg4: memref<1x32xf32, #tpu.memory_space<vmem>>, %arg5: memref<32x2xf32, #tpu.memory_space<vmem>>, %arg6: memref<8x32xbf16, #tpu.memory_space<vmem>>, %arg7: memref<8x32xf32, #tpu.memory_space<vmem>>, %arg8: memref<8x2xf32, #tpu.memory_space<vmem>>) attributes {dimension_semantics = [#tpu.dimension_semantics<parallel>], iteration_bounds = array<i64: 4>, scalar_prefetch = 0 : i64, scratch_operands = 0 : i64, tpu.core_type = #tpu.core_type<tc>, window_params = [{pipeline_mode = #tpu.pipeline_mode<synchronous>, transform_indices = @transform_0, window_bounds = array<i64: 32, 32>}, {pipeline_mode = #tpu.pipeline_mode<synchronous>, transform_indices = @transform_1, window_bounds = array<i64: 2, 32>}, {transform_indices = @transform_2, window_bounds = array<i64: 8, 2>}, {pipeline_mode = #tpu.pipeline_mode<synchronous>, transform_indices = @transform_3, window_bounds = array<i64: 1, 32>}, {pipeline_mode = #tpu.pipeline_mode<synchronous>, transform_indices = @transform_4, window_bounds = array<i64: 32, 2>}, {transform_indices = @transform_5, window_bounds = array<i64: 8, 32>}, {transform_indices = @transform_6, window_bounds = array<i64: 8, 32>}, {transform_indices = @transform_7, window_bounds = array<i64: 8, 2>}]} {
    %c0 = arith.constant 0 : index
    %c0_0 = arith.constant 0 : index
    %0 = vector.load %arg6[%c0, %c0_0] : memref<8x32xbf16, #tpu.memory_space<vmem>>, vector<8x32xbf16>
    %cst = arith.constant 0.000000e+00 : bf16
    %1 = vector.broadcast %cst : bf16 to vector<8x32xbf16>
    %2 = arith.cmpf ogt, %0, %1 : vector<8x32xbf16>
    %c0_1 = arith.constant 0 : index
    %c0_2 = arith.constant 0 : index
    %3 = vector.load %arg3[%c0_1, %c0_2] : memref<8x2xf32, #tpu.memory_space<vmem>>, vector<8x2xf32>
    %4 = vector.extract_strided_slice %3 {offsets = [0, 0], sizes = [8, 1], strides = [1, 1]} : vector<8x2xf32> to vector<8x1xf32>
    %c0_3 = arith.constant 0 : index
    %c0_4 = arith.constant 0 : index
    %5 = vector.load %arg2[%c0_3, %c0_4] : memref<2x32xf32, #tpu.memory_space<vmem>>, vector<1x32xf32>
    %6 = vector.broadcast %4 : vector<8x1xf32> to vector<8x32xf32>
    %7 = vector.broadcast %5 : vector<1x32xf32> to vector<8x32xf32>
    %8 = arith.addf %6, %7 : vector<8x32xf32>
    %cst_5 = arith.constant 0.000000e+00 : f32
    %9 = vector.broadcast %cst_5 : f32 to vector<8x32xf32>
    %10 = arith.cmpf ogt, %8, %9 : vector<8x32xf32>
    %cst_6 = arith.constant 2.000000e-01 : f32
    %11 = vector.broadcast %cst_6 : f32 to vector<8x32xf32>
    %12 = arith.mulf %11, %8 : vector<8x32xf32>
    %13 = arith.select %10, %8, %12 : vector<8x32xi1>, vector<8x32xf32>
    %cst_7 = arith.constant -1.000000e+30 : f32
    %14 = vector.broadcast %cst_7 : f32 to vector<8x32xf32>
    %15 = arith.select %2, %13, %14 : vector<8x32xi1>, vector<8x32xf32>
    %cst_8 = arith.constant dense<0xFF800000> : vector<8xf32>
    %16 = vector.multi_reduction <maximumf>, %15, %cst_8 [1] : vector<8x32xf32> to vector<8xf32>
    %17 = vector.shape_cast %16 : vector<8xf32> to vector<8x1xf32>
    %18 = vector.broadcast %17 : vector<8x1xf32> to vector<8x32xf32>
    %19 = arith.subf %15, %18 : vector<8x32xf32>
    %20 = math.exp %19 : vector<8x32xf32>
    %cst_9 = arith.constant dense<0.000000e+00> : vector<8xf32>
    %21 = vector.multi_reduction <add>, %20, %cst_9 [1] : vector<8x32xf32> to vector<8xf32>
    %22 = vector.shape_cast %21 : vector<8xf32> to vector<8x1xf32>
    %23 = tpu.reciprocal %22 {approx = true} : vector<8x1xf32> -> vector<8x1xf32>
    %24 = vector.broadcast %23 : vector<8x1xf32> to vector<8x32xf32>
    %25 = arith.mulf %20, %24 : vector<8x32xf32>
    %26 = arith.truncf %25 : vector<8x32xf32> to vector<8x32xbf16>
    %c0_10 = arith.constant 0 : index
    %c0_11 = arith.constant 0 : index
    %27 = vector.load %arg1[%c0_10, %c0_11] : memref<32x32xbf16, #tpu.memory_space<vmem>>, vector<32x16xbf16>
    %cst_12 = arith.constant dense<0.000000e+00> : vector<8x16xf32>
    %28 = tpu.matmul %26, %27, %cst_12 {dimension_numbers = #tpu.dot_dimension_numbers<[1], [0], [0], [1], [0, 0, 1, 1], [], []>} : vector<8x32xbf16>, vector<32x16xbf16>, vector<8x16xf32> -> vector<8x16xf32>
    %29 = vector.extract_strided_slice %3 {offsets = [0, 1], sizes = [8, 1], strides = [1, 1]} : vector<8x2xf32> to vector<8x1xf32>
    %c1 = arith.constant 1 : index
    %c0_13 = arith.constant 0 : index
    %30 = vector.load %arg2[%c1, %c0_13] : memref<2x32xf32, #tpu.memory_space<vmem>>, vector<1x32xf32>
    %31 = vector.broadcast %29 : vector<8x1xf32> to vector<8x32xf32>
    %32 = vector.broadcast %30 : vector<1x32xf32> to vector<8x32xf32>
    %33 = arith.addf %31, %32 : vector<8x32xf32>
    %cst_14 = arith.constant 0.000000e+00 : f32
    %34 = vector.broadcast %cst_14 : f32 to vector<8x32xf32>
    %35 = arith.cmpf ogt, %33, %34 : vector<8x32xf32>
    %cst_15 = arith.constant 2.000000e-01 : f32
    %36 = vector.broadcast %cst_15 : f32 to vector<8x32xf32>
    %37 = arith.mulf %36, %33 : vector<8x32xf32>
    %38 = arith.select %35, %33, %37 : vector<8x32xi1>, vector<8x32xf32>
    %cst_16 = arith.constant -1.000000e+30 : f32
    %39 = vector.broadcast %cst_16 : f32 to vector<8x32xf32>
    %40 = arith.select %2, %38, %39 : vector<8x32xi1>, vector<8x32xf32>
    %cst_17 = arith.constant dense<0xFF800000> : vector<8xf32>
    %41 = vector.multi_reduction <maximumf>, %40, %cst_17 [1] : vector<8x32xf32> to vector<8xf32>
    %42 = vector.shape_cast %41 : vector<8xf32> to vector<8x1xf32>
    %43 = vector.broadcast %42 : vector<8x1xf32> to vector<8x32xf32>
    %44 = arith.subf %40, %43 : vector<8x32xf32>
    %45 = math.exp %44 : vector<8x32xf32>
    %cst_18 = arith.constant dense<0.000000e+00> : vector<8xf32>
    %46 = vector.multi_reduction <add>, %45, %cst_18 [1] : vector<8x32xf32> to vector<8xf32>
    %47 = vector.shape_cast %46 : vector<8xf32> to vector<8x1xf32>
    %48 = tpu.reciprocal %47 {approx = true} : vector<8x1xf32> -> vector<8x1xf32>
    %49 = vector.broadcast %48 : vector<8x1xf32> to vector<8x32xf32>
    %50 = arith.mulf %45, %49 : vector<8x32xf32>
    %51 = arith.truncf %50 : vector<8x32xf32> to vector<8x32xbf16>
    %c0_19 = arith.constant 0 : index
    %c16 = arith.constant 16 : index
    %52 = vector.load %arg1[%c0_19, %c16] : memref<32x32xbf16, #tpu.memory_space<vmem>>, vector<32x16xbf16>
    %cst_20 = arith.constant dense<0.000000e+00> : vector<8x16xf32>
    %53 = tpu.matmul %51, %52, %cst_20 {dimension_numbers = #tpu.dot_dimension_numbers<[1], [0], [0], [1], [0, 0, 1, 1], [], []>} : vector<8x32xbf16>, vector<32x16xbf16>, vector<8x16xf32> -> vector<8x16xf32>
    %54 = tpu.concatenate %28, %53 in 1 : vector<8x16xf32>, vector<8x16xf32> -> vector<8x32xf32>
    %c0_21 = arith.constant 0 : index
    %c0_22 = arith.constant 0 : index
    %55 = vector.load %arg4[%c0_21, %c0_22] : memref<1x32xf32, #tpu.memory_space<vmem>>, vector<1x32xf32>
    %56 = vector.broadcast %55 : vector<1x32xf32> to vector<8x32xf32>
    %57 = arith.addf %54, %56 : vector<8x32xf32>
    %c0_23 = arith.constant 0 : index
    %c0_24 = arith.constant 0 : index
    %58 = vector.load %arg7[%c0_23, %c0_24] : memref<8x32xf32, #tpu.memory_space<vmem>>, vector<8x32xf32>
    tpu.vector_store %arg7[%c0_23, %c0_24], %57 {strides = array<i32>} : memref<8x32xf32, #tpu.memory_space<vmem>>, vector<8x32xf32>,
    %c0_25 = arith.constant 0 : index
    %c0_26 = arith.constant 0 : index
    %59 = vector.load %arg5[%c0_25, %c0_26] : memref<32x2xf32, #tpu.memory_space<vmem>>, vector<32x2xf32>
    %cst_27 = arith.constant dense<0.000000e+00> : vector<8x2xf32>
    %60 = tpu.matmul %57, %59, %cst_27 {dimension_numbers = #tpu.dot_dimension_numbers<[1], [0], [0], [1], [0, 0, 1, 1], [], []>} : vector<8x32xf32>, vector<32x2xf32>, vector<8x2xf32> -> vector<8x2xf32>
    %c0_28 = arith.constant 0 : index
    %c0_29 = arith.constant 0 : index
    %61 = vector.load %arg8[%c0_28, %c0_29] : memref<8x2xf32, #tpu.memory_space<vmem>>, vector<8x2xf32>
    tpu.vector_store %arg8[%c0_28, %c0_29], %60 {strides = array<i32>} : memref<8x2xf32, #tpu.memory_space<vmem>>, vector<8x2xf32>,
    return
  }
  func.func @transform_0(%arg0: i32) -> (i32, i32) {
    %c0_i32 = arith.constant 0 : i32
    %c0_i32_0 = arith.constant 0 : i32
    %c0_i32_1 = arith.constant 0 : i32
    return %c0_i32, %c0_i32_0 : i32, i32
  }
  func.func @transform_1(%arg0: i32) -> (i32, i32) {
    %c0_i32 = arith.constant 0 : i32
    %c0_i32_0 = arith.constant 0 : i32
    %c0_i32_1 = arith.constant 0 : i32
    return %c0_i32, %c0_i32_0 : i32, i32
  }
  func.func @transform_2(%arg0: i32) -> (i32, i32) {
    %c0_i32 = arith.constant 0 : i32
    %c0_i32_0 = arith.constant 0 : i32
    return %arg0, %c0_i32 : i32, i32
  }
  func.func @transform_3(%arg0: i32) -> (i32, i32) {
    %c0_i32 = arith.constant 0 : i32
    %c0_i32_0 = arith.constant 0 : i32
    %c0_i32_1 = arith.constant 0 : i32
    return %c0_i32, %c0_i32_0 : i32, i32
  }
  func.func @transform_4(%arg0: i32) -> (i32, i32) {
    %c0_i32 = arith.constant 0 : i32
    %c0_i32_0 = arith.constant 0 : i32
    %c0_i32_1 = arith.constant 0 : i32
    return %c0_i32, %c0_i32_0 : i32, i32
  }
  func.func @transform_5(%arg0: i32) -> (i32, i32) {
    %c0_i32 = arith.constant 0 : i32
    %c0_i32_0 = arith.constant 0 : i32
    return %arg0, %c0_i32 : i32, i32
  }
  func.func @transform_6(%arg0: i32) -> (i32, i32) {
    %c0_i32 = arith.constant 0 : i32
    %c0_i32_0 = arith.constant 0 : i32
    return %arg0, %c0_i32 : i32, i32
  }
  func.func @transform_7(%arg0: i32) -> (i32, i32) {
    %c0_i32 = arith.constant 0 : i32
    %c0_i32_0 = arith.constant 0 : i32
    return %arg0, %c0_i32 : i32, i32
  }
}

module attributes {stable_mosaic.version = 11 : i64} {
  func.func @_finalize_kernel(%arg0: i32, %arg1: memref<32x32xf32, #tpu.memory_space<vmem>>, %arg2: memref<32x2xf32, #tpu.memory_space<vmem>>, %arg3: memref<32x1xf32, #tpu.memory_space<vmem>>, %arg4: memref<2x32xf32, #tpu.memory_space<vmem>>) attributes {dimension_semantics = [#tpu.dimension_semantics<arbitrary>], iteration_bounds = array<i64: 1>, scalar_prefetch = 0 : i64, scratch_operands = 0 : i64, tpu.core_type = #tpu.core_type<tc>, window_params = [{pipeline_mode = #tpu.pipeline_mode<synchronous>, transform_indices = @transform_0, window_bounds = array<i64: 32, 32>}, {pipeline_mode = #tpu.pipeline_mode<synchronous>, transform_indices = @transform_1, window_bounds = array<i64: 32, 2>}, {pipeline_mode = #tpu.pipeline_mode<synchronous>, transform_indices = @transform_2, window_bounds = array<i64: 32, 1>}, {pipeline_mode = #tpu.pipeline_mode<synchronous>, transform_indices = @transform_3, window_bounds = array<i64: 2, 32>}]} {
    %c0 = arith.constant 0 : index
    %c0_0 = arith.constant 0 : index
    %0 = vector.load %arg2[%c0, %c0_0] : memref<32x2xf32, #tpu.memory_space<vmem>>, vector<32x2xf32>
    %cst = arith.constant 0.000000e+00 : f32
    %1 = vector.broadcast %cst : f32 to vector<32x2xf32>
    %2 = arith.cmpf ogt, %0, %1 : vector<32x2xf32>
    %c0_1 = arith.constant 0 : index
    %c0_2 = arith.constant 0 : index
    %3 = vector.load %arg3[%c0_1, %c0_2] : memref<32x1xf32, #tpu.memory_space<vmem>>, vector<32x1xf32>
    %cst_3 = arith.constant -1.000000e+30 : f32
    %4 = vector.shape_cast %3 : vector<32x1xf32> to vector<32x1xf32>
    %5 = vector.broadcast %4 : vector<32x1xf32> to vector<32x2xf32>
    %6 = vector.broadcast %cst_3 : f32 to vector<32x2xf32>
    %7 = arith.select %2, %5, %6 : vector<32x2xi1>, vector<32x2xf32>
    %cst_4 = arith.constant dense<0xFF800000> : vector<2xf32>
    %8 = vector.multi_reduction <maximumf>, %7, %cst_4 [0] : vector<32x2xf32> to vector<2xf32>
    %9 = vector.shape_cast %8 : vector<2xf32> to vector<1x2xf32>
    %10 = vector.broadcast %9 : vector<1x2xf32> to vector<32x2xf32>
    %11 = arith.subf %7, %10 : vector<32x2xf32>
    %12 = math.exp %11 : vector<32x2xf32>
    %13 = arith.mulf %12, %0 : vector<32x2xf32>
    %cst_5 = arith.constant dense<0.000000e+00> : vector<2xf32>
    %14 = vector.multi_reduction <add>, %13, %cst_5 [0] : vector<32x2xf32> to vector<2xf32>
    %15 = vector.shape_cast %14 : vector<2xf32> to vector<1x2xf32>
    %cst_6 = arith.constant 9.99999971E-10 : f32
    %16 = vector.broadcast %cst_6 : f32 to vector<1x2xf32>
    %17 = arith.maximumf %15, %16 : vector<1x2xf32>
    %18 = vector.broadcast %17 : vector<1x2xf32> to vector<32x2xf32>
    %19 = arith.divf %13, %18 : vector<32x2xf32>
    %c0_7 = arith.constant 0 : index
    %c0_8 = arith.constant 0 : index
    %20 = vector.load %arg1[%c0_7, %c0_8] : memref<32x32xf32, #tpu.memory_space<vmem>>, vector<32x32xf32>
    %cst_9 = arith.constant dense<0.000000e+00> : vector<32xf32>
    %21 = vector.multi_reduction <add>, %19, %cst_9 [1] : vector<32x2xf32> to vector<32xf32>
    %22 = vector.shape_cast %21 : vector<32xf32> to vector<32x1xf32>
    %23 = vector.broadcast %22 : vector<32x1xf32> to vector<32x32xf32>
    %24 = arith.mulf %20, %23 : vector<32x32xf32>
    %cst_10 = arith.constant dense<0.000000e+00> : vector<2x32xf32>
    %25 = tpu.matmul %0, %24, %cst_10 {dimension_numbers = #tpu.dot_dimension_numbers<[0], [0], [1], [1], [0, 1, 1, 1], [], []>} : vector<32x2xf32>, vector<32x32xf32>, vector<2x32xf32> -> vector<2x32xf32>
    %c0_11 = arith.constant 0 : index
    %c0_12 = arith.constant 0 : index
    %26 = vector.load %arg4[%c0_11, %c0_12] : memref<2x32xf32, #tpu.memory_space<vmem>>, vector<2x32xf32>
    tpu.vector_store %arg4[%c0_11, %c0_12], %25 {strides = array<i32>} : memref<2x32xf32, #tpu.memory_space<vmem>>, vector<2x32xf32>,
    return
  }
  func.func @transform_0(%arg0: i32) -> (i32, i32) {
    %c0_i32 = arith.constant 0 : i32
    %c0_i32_0 = arith.constant 0 : i32
    %c0_i32_1 = arith.constant 0 : i32
    return %c0_i32, %c0_i32_0 : i32, i32
  }
  func.func @transform_1(%arg0: i32) -> (i32, i32) {
    %c0_i32 = arith.constant 0 : i32
    %c0_i32_0 = arith.constant 0 : i32
    %c0_i32_1 = arith.constant 0 : i32
    return %c0_i32, %c0_i32_0 : i32, i32
  }
  func.func @transform_2(%arg0: i32) -> (i32, i32) {
    %c0_i32 = arith.constant 0 : i32
    %c0_i32_0 = arith.constant 0 : i32
    %c0_i32_1 = arith.constant 0 : i32
    return %c0_i32, %c0_i32_0 : i32, i32
  }
  func.func @transform_3(%arg0: i32) -> (i32, i32) {
    %c0_i32 = arith.constant 0 : i32
    %c0_i32_0 = arith.constant 0 : i32
    %c0_i32_1 = arith.constant 0 : i32
    return %c0_i32, %c0_i32_0 : i32, i32
  }
}

</mosaic_0001>

<llo_original>
// kernel: ssi_ddi_block.4
$region0: #{ssi_ddi_block.4}
  #allocation0 [shape = 'u32[]', space=smem, size = 0x4, offset = 0x4, fixed_abs, tag = 'smem constant byte address 0x4 - core index']
  #allocation1 [shape = 'u32[144,128]{1,0:T(1,128)}', space=vmem, size = 0x12000, scoped, tag = 'internal scratch']
  %s0 = inlined_call_operand.vmem [shape: f32[32,32], index: 0, kind: input, shape index: {}]
  %s1 = inlined_call_operand.vmem [shape: f32[32,36], index: 1, kind: input, shape index: {}]
  %s2 = inlined_call_operand.vmem [shape: bf16[32,32], index: 2, kind: output, shape index: {0}]
  %s3 = inlined_call_operand.vmem [shape: f32[32,4], index: 3, kind: output, shape index: {1}]
  %4 = xla_tuple %s2, %s3
  %s5 = sld [smem:[#allocation0]]
  $region49: #{ssi_ddi_block.4} parent=0
    _
  %s7 = ssub.s32 1, %s5
  %s8 = scalar_select 0, %s7, %s5
  loop: start=0, step=1, limit=6
  $region2: #{ssi_ddi_block.4} parent=0 // loop_pre_header
    _
  $region3: #{ssi_ddi_block.4} parent=0 // loop_header
    %s10 = sphi 0, %s14
    %p11 = scmp.ge.s32.totalorder %s10, 6
    %s20 = sphi 0, %s22
    %s23 = sphi 0, %s20
    %s24 = sphi 0, %s23
    %s40 = sphi 0, %s24
    %s44 = sphi 0, %s44
    %s46 = sphi 0, %s44
    %s47 = sphi 0, %s46
    %s61 = sphi 0, %s47
    %s67 = sphi 0, %s69
    %s70 = sphi 0, %s67
    %s71 = sphi 0, %s70
    %s87 = sphi 0, %s71
    %s93 = sphi 0, %s95
    %s96 = sphi 0, %s93
    %s97 = sphi 0, %s96
    %s113 = sphi 0, %s97
  $region4: #{ssi_ddi_block.4} parent=0 // loop_header_branch
    %13 = sbr.rel (%p11) target = $region8
  $region5: #{ssi_ddi_block.4} parent=0 // loop_body
    %s15 = ssub.s32 %s10, 1
    %s16 = ssub.s32 %s10, 2
    %s17 = sadd.s32 %s10, 1
    %s18 = ssub.s32 %s10, %s17
    %p19 = scmp.eq.s32.totalorder %s18, 0
    %s21 = sadd.s32 %s20, 1
    %s22 = scalar_select %p19, %s20, %s21
    %p25 = pneg %p19
    %p26 = scmp.eq.s32.totalorder %s10, 3
    %p27 = por %p25, %p26
    %p28 = scmp.ne.s32.totalorder %s20, %s23
    %p29 = scmp.eq.s32.totalorder %s10, 0
    %p30 = por %p28, %p29
    %p31 = scmp.ne.s32.totalorder %s20, %s23
    %p32 = scmp.eq.s32.totalorder %s15, 3
    %p33 = por %p31, %p32
    %p34 = scmp.ne.s32.totalorder %s23, %s24
    %p35 = scmp.eq.s32.totalorder %s15, 0
    %p36 = por %p34, %p35
    %p37 = scmp.ne.s32.totalorder %s23, %s24
    %p38 = scmp.eq.s32.totalorder %s16, 3
    %p39 = por %p37, %p38
    %p41 = scmp.ne.s32.totalorder %s24, %s40
    %p42 = scmp.eq.s32.totalorder %s16, 0
    %p43 = por %p41, %p42
    %s45 = sadd.s32 %s44, 1
    %p48 = scmp.eq.s32.totalorder %s10, 3
    %p49 = scmp.ne.s32.totalorder %s44, %s46
    %p50 = scmp.eq.s32.totalorder %s10, 0
    %p51 = por %p49, %p50
    %p52 = scmp.ne.s32.totalorder %s44, %s46
    %p53 = scmp.eq.s32.totalorder %s15, 3
    %p54 = por %p52, %p53
    %p55 = scmp.ne.s32.totalorder %s46, %s47
    %p56 = scmp.eq.s32.totalorder %s15, 0
    %p57 = por %p55, %p56
    %p58 = scmp.ne.s32.totalorder %s46, %s47
    %p59 = scmp.eq.s32.totalorder %s16, 3
    %p60 = por %p58, %p59
    %p62 = scmp.ne.s32.totalorder %s47, %s61
    %p63 = scmp.eq.s32.totalorder %s16, 0
    %p64 = por %p62, %p63
    %s65 = ssub.s32 %s10, %s17
    %p66 = scmp.eq.s32.totalorder %s65, 0
    %s68 = sadd.s32 %s67, 1
    %s69 = scalar_select %p66, %s67, %s68
    %p72 = pneg %p66
    %p73 = scmp.eq.s32.totalorder %s10, 3
    %p74 = por %p72, %p73
    %p75 = scmp.ne.s32.totalorder %s67, %s70
    %p76 = scmp.eq.s32.totalorder %s10, 0
    %p77 = por %p75, %p76
    %p78 = scmp.ne.s32.totalorder %s67, %s70
    %p79 = scmp.eq.s32.totalorder %s15, 3
    %p80 = por %p78, %p79
    %p81 = scmp.ne.s32.totalorder %s70, %s71
    %p82 = scmp.eq.s32.totalorder %s15, 0
    %p83 = por %p81, %p82
    %p84 = scmp.ne.s32.totalorder %s70, %s71
    %p85 = scmp.eq.s32.totalorder %s16, 3
    %p86 = por %p84, %p85
    %p88 = scmp.ne.s32.totalorder %s71, %s87
    %p89 = scmp.eq.s32.totalorder %s16, 0
    %p90 = por %p88, %p89
    %s91 = ssub.s32 %s10, %s17
    %p92 = scmp.eq.s32.totalorder %s91, 0
    %s94 = sadd.s32 %s93, 1
    %s95 = scalar_select %p92, %s93, %s94
    %p98 = pneg %p92
    %p99 = scmp.eq.s32.totalorder %s10, 3
    %p100 = por %p98, %p99
    %p101 = scmp.ne.s32.totalorder %s93, %s96
    %p102 = scmp.eq.s32.totalorder %s10, 0
    %p103 = por %p101, %p102
    %p104 = scmp.ne.s32.totalorder %s93, %s96
    %p105 = scmp.eq.s32.totalorder %s15, 3
    %p106 = por %p104, %p105
    %p107 = scmp.ne.s32.totalorder %s96, %s97
    %p108 = scmp.eq.s32.totalorder %s15, 0
    %p109 = por %p107, %p108
    %p110 = scmp.ne.s32.totalorder %s96, %s97
    %p111 = scmp.eq.s32.totalorder %s16, 3
    %p112 = por %p110, %p111
    %p114 = scmp.ne.s32.totalorder %s97, %s113
    %p115 = scmp.eq.s32.totalorder %s16, 0
    %p116 = por %p114, %p115
    %p117 = scmp.le.s32.totalorder 1, %s10
    %p118 = scmp.lt.s32.totalorder %s10, 5
    %p119 = pnand %p117, %p118
    %p120 = pneg %p119
    // Predicated region
    $region9: #{ssi_ddi_block.4} parent=5 // pred_check
      _
    $region10: #{ssi_ddi_block.4} parent=5 // pred_check_branch
      %122 = sbr.rel (%p119) target = $region12
    $region11: #{ssi_ddi_block.4} parent=5 // pred_region
      %s123 = ssub.s32 %s10, 1
      // Predicated region
      $region13: #{ssi_ddi_block.4} parent=11 // pred_check
        %p124 = pneg %p57
      $region14: #{ssi_ddi_block.4} parent=11 // pred_check_branch
        %126 = sbr.rel (%p124) target = $region16
      $region15: #{ssi_ddi_block.4} parent=11 // pred_region
        _
      $region16: #{ssi_ddi_block.4} parent=11 // pred_fallthru
        _
    $region12: #{ssi_ddi_block.4} parent=5 // pred_fallthru
      _
    %p127 = scmp.lt.s32.totalorder %s10, 4
    // Predicated region
    $region17: #{ssi_ddi_block.4} parent=5 // pred_check
      %p128 = pneg %p127
    $region18: #{ssi_ddi_block.4} parent=5 // pred_check_branch
      %130 = sbr.rel (%p128) target = $region20
    $region19: #{ssi_ddi_block.4} parent=5 // pred_region
      // Predicated region
      $region21: #{ssi_ddi_block.4} parent=19 // pred_check
        %p131 = pneg %p30
      $region22: #{ssi_ddi_block.4} parent=19 // pred_check_branch
        %133 = sbr.rel (%p131) target = $region24
      $region23: #{ssi_ddi_block.4} parent=19 // pred_region
        %p134 = scmp.lt.s32.totalorder %s10, 3
        %s135 = scalar_select %p134, %s10, 3
        %s136 = smul.addr %s135, 8
        %s137 = scalar_lea.vmem %s0, %s136
      $region24: #{ssi_ddi_block.4} parent=19 // pred_fallthru
        _
    $region20: #{ssi_ddi_block.4} parent=5 // pred_fallthru
      _
    %p138 = scmp.le.s32.totalorder 1, %s10
    %p139 = scmp.lt.s32.totalorder %s10, 5
    %p140 = pnand %p138, %p139
    %p141 = pneg %p140
    // Predicated region
    $region25: #{ssi_ddi_block.4} parent=5 // pred_check
      _
    $region26: #{ssi_ddi_block.4} parent=5 // pred_check_branch
      %143 = sbr.rel (%p140) target = $region28
    $region27: #{ssi_ddi_block.4} parent=5 // pred_region
      %s144 = ssub.s32 %s10, 1
      %p145 = scmp.lt.s32.totalorder %s15, 3
      %s146 = scalar_select %p145, %s15, 3
      %s147 = smul.addr %s146, 8
      %s148 = scalar_lea.vmem %s0, %s147
      %p149 = pneg %p36
      %p150 = pneg %p33
      %p151 = pneg %p57
      %p152 = pneg %p54
      %p153 = pneg %p83
      %p154 = pneg %p80
      %p155 = scmp.lt.s32.totalorder %s15, 3
      %s156 = scalar_select %p155, %s15, 3
      %s157 = smul.addr %s156, 4
      %s158 = scalar_lea.vmem %s2, %s157
      %p159 = pneg %p109
      %p160 = pneg %p106
      %p161 = scmp.lt.s32.totalorder %s15, 3
      %s162 = scalar_select %p161, %s15, 3
      %s163 = smul.addr %s162, 8
      %s164 = scalar_lea.vmem %s3, %s163
      %p165 = scmp.lt.s32.totalorder %s15, 3
      %s166 = scalar_select %p165, %s15, 3
      %s167 = smul.addr %s166, 8
      %s168 = scalar_lea.vmem %s0, %s167
      %p169 = scmp.lt.s32.totalorder %s15, 3
      %s170 = scalar_select %p169, %s15, 3
      %s171 = smul.addr %s170, 4
      %s172 = scalar_lea.vmem %s2, %s171
      %p173 = scmp.lt.s32.totalorder %s15, 3
      %s174 = scalar_select %p173, %s15, 3
      %s175 = smul.addr %s174, 8
      %s176 = scalar_lea.vmem %s3, %s175
      %v177 = vld [vmem:[%s168] sm:$0xff]
      %v178 = vld [vmem:[%s1] sm:$0xff]
      %v179 = vld [vmem:[%s1 + $0x8] sm:$0xff]
      %v180 = vld [vmem:[%s1 + $0x10] sm:$0xff]
      %v181 = vld [vmem:[%s1 + $0x18] sm:$0xff]
      %vm182 = vcmask 261120
      %v184 = vsel %vm182, %v177, 0
      %186 = vmatprep.subr.mxu0 0.0
      %187 = vmatpush1.msra.mxu0 0.0
      %188 = vmatprep.subr.mxu0 0.0
      %189 = vmatpush1.msra.mxu0 0.0
      %190 = vmatprep.subr.mxu0 0.0
      %191 = vmatpush1.msra.mxu0 0.0
      %192 = vmatprep.subr.mxu0 0.0
      %193 = vmatpush1.msra.mxu0 0.0
      %194 = vmatprep.subr.mxu0 0.0
      %195 = vmatpush1.msra.mxu0 0.0
      %196 = vmatprep.subr.mxu0 0.0
      %197 = vmatpush1.msra.mxu0 0.0
      %198 = vmatprep.subr.mxu0 0.0
      %199 = vmatpush1.msra.mxu0 0.0
      %200 = vmatprep.subr.mxu0 0.0
      %201 = vmatpush1.msra.mxu0 0.0
      %202 = vmatprep.subr.mxu0 0.0
      %203 = vmatpush1.msra.mxu0 0.0
      %204 = vmatprep.subr.mxu0 0.0
      %205 = vmatpush1.msra.mxu0 0.0
      %206 = vmatprep.subr.mxu0 0.0
      %207 = vmatpush1.msra.mxu0 0.0
      %208 = vmatprep.subr.mxu0 0.0
      %209 = vmatpush1.msra.mxu0 0.0
      %210 = vmatprep.subr.mxu0 0.0
      %211 = vmatpush1.msra.mxu0 %v181
      %212 = vmatprep.subr.mxu0 0.0
      %213 = vmatpush1.msra.mxu0 %v180
      %214 = vmatprep.subr.mxu0 0.0
      %215 = vmatpush1.msra.mxu0 %v179
      %216 = vmatprep.subr.mxu0 0.0
      %217 = vmatpush1.msra.mxu0 %v178
      %218 = vmatprep.subr.mxu0 0.0
      %219 = vmatpush2.msra.mxu0 0.0
      %220 = vmatprep.subr.mxu0 0.0
      %221 = vmatpush2.msra.mxu0 0.0
      %222 = vmatprep.subr.mxu0 0.0
      %223 = vmatpush2.msra.mxu0 0.0
      %224 = vmatprep.subr.mxu0 0.0
      %225 = vmatpush2.msra.mxu0 0.0
      %226 = vmatprep.subr.mxu0 0.0
      %227 = vmatpush2.msra.mxu0 0.0
      %228 = vmatprep.subr.mxu0 0.0
      %229 = vmatpush2.msra.mxu0 0.0
      %230 = vmatprep.subr.mxu0 0.0
      %231 = vmatpush2.msra.mxu0 0.0
      %232 = vmatprep.subr.mxu0 0.0
      %233 = vmatpush2.msra.mxu0 0.0
      %234 = vmatprep.subr.mxu0 0.0
      %235 = vmatpush2.msra.mxu0 0.0
      %236 = vmatprep.subr.mxu0 0.0
      %237 = vmatpush2.msra.mxu0 0.0
      %238 = vmatprep.subr.mxu0 0.0
      %239 = vmatpush2.msra.mxu0 0.0
      %240 = vmatprep.subr.mxu0 0.0
      %241 = vmatpush2.msra.mxu0 0.0
      %242 = vmatprep.subr.mxu0 0.0
      %243 = vmatpush2.msra.mxu0 0.0
      %244 = vmatprep.subr.mxu0 0.0
      %245 = vmatpush2.msra.mxu0 0.0
      %246 = vmatprep.subr.mxu0 0.0
      %247 = vmatpush2.msra.mxu0 0.0
      %248 = vmatprep.subr.mxu0 0.0
      %249 = vmatpush2.msra.mxu0 0.0
      %250 = vmatprep.mubr.f32.mxu0 0.0
      %251 = vmatmul.mubr.f32.gmra.mxu0 %v184
      %v252 = vpop.f32.mrf.mxu0
      %v253 = vadd.f32 0.0, %v252
      %v254 = vpop.f32.mrf.mxu0
      %255 = vdwg.mxu0
      %v256 = vpack.c.bf16 %v253, %v253
      %vm257 = vcmask 257024
      %258 = vst.msk [vmem:[%s172] sm:$0xf] %vm257, %v256
      %260 = vrot.lane.b32.xlu0 %v253, 96
      %v261 = vpop.permute.xlu0 %260
      %vm263 = vcmask 31744
      %264 = vst.msk [vmem:[%s176] sm:$0xff] %vm263, %v261
      %p265 = scmp.lt.s32.totalorder %s15, 3
      %s266 = scalar_select %p265, %s15, 3
      %s267 = smul.addr %s266, 4
      %s268 = scalar_lea.vmem %s2, %s267
      %p269 = scmp.lt.s32.totalorder %s15, 3
      %s270 = scalar_select %p269, %s15, 3
      %s271 = smul.addr %s270, 8
      %s272 = scalar_lea.vmem %s3, %s271
      // Predicated region
      $region29: #{ssi_ddi_block.4} parent=27 // pred_check
        %p273 = pneg %p80
      $region30: #{ssi_ddi_block.4} parent=27 // pred_check_branch
        %275 = sbr.rel (%p273) target = $region32
      $region31: #{ssi_ddi_block.4} parent=27 // pred_region
        _
      $region32: #{ssi_ddi_block.4} parent=27 // pred_fallthru
        _
      // Predicated region
      $region33: #{ssi_ddi_block.4} parent=27 // pred_check
        %p276 = pneg %p106
      $region34: #{ssi_ddi_block.4} parent=27 // pred_check_branch
        %278 = sbr.rel (%p276) target = $region36
      $region35: #{ssi_ddi_block.4} parent=27 // pred_region
        _
      $region36: #{ssi_ddi_block.4} parent=27 // pred_fallthru
        _
    $region28: #{ssi_ddi_block.4} parent=5 // pred_fallthru
      _
    %p279 = scmp.le.s32.totalorder 2, %s10
    // Predicated region
    $region37: #{ssi_ddi_block.4} parent=5 // pred_check
      %p280 = pneg %p279
    $region38: #{ssi_ddi_block.4} parent=5 // pred_check_branch
      %282 = sbr.rel (%p280) target = $region40
    $region39: #{ssi_ddi_block.4} parent=5 // pred_region
      %s283 = ssub.s32 %s10, 2
      // Predicated region
      $region41: #{ssi_ddi_block.4} parent=39 // pred_check
        %p284 = pneg %p86
      $region42: #{ssi_ddi_block.4} parent=39 // pred_check_branch
        %286 = sbr.rel (%p284) target = $region44
      $region43: #{ssi_ddi_block.4} parent=39 // pred_region
        %p287 = scmp.lt.s32.totalorder %s16, 3
        %s288 = scalar_select %p287, %s16, 3
        %s289 = smul.addr %s288, 4
        %s290 = scalar_lea.vmem %s2, %s289
      $region44: #{ssi_ddi_block.4} parent=39 // pred_fallthru
        _
      // Predicated region
      $region45: #{ssi_ddi_block.4} parent=39 // pred_check
        %p291 = pneg %p112
      $region46: #{ssi_ddi_block.4} parent=39 // pred_check_branch
        %293 = sbr.rel (%p291) target = $region48
      $region47: #{ssi_ddi_block.4} parent=39 // pred_region
        %p294 = scmp.lt.s32.totalorder %s16, 3
        %s295 = scalar_select %p294, %s16, 3
        %s296 = smul.addr %s295, 8
        %s297 = scalar_lea.vmem %s3, %s296
      $region48: #{ssi_ddi_block.4} parent=39 // pred_fallthru
        _
    $region40: #{ssi_ddi_block.4} parent=5 // pred_fallthru
      _
  $region6: #{ssi_ddi_block.4} parent=0 // loop_footer
    %s14 = sadd.s32 1, %s10
  $region7: #{ssi_ddi_block.4} parent=0 // loop_footer_branch
    %9 = sbr.rel target = $region3
  $region8: #{ssi_ddi_block.4} parent=0 // loop_exit
    _

// kernel: ssi_ddi_block.6
$region0: #{ssi_ddi_block.6}
  #allocation0 [shape = 'u32[]', space=smem, size = 0x4, offset = 0x4, fixed_abs, tag = 'smem constant byte address 0x4 - core index']
  #allocation1 [shape = 'u32[144,128]{1,0:T(1,128)}', space=vmem, size = 0x12000, scoped, tag = 'internal scratch']
  %s0 = inlined_call_operand.vmem [shape: f32[32,2], index: 0, kind: input, shape index: {}]
  %s1 = inlined_call_operand.vmem [shape: bf16[32,32], index: 1, kind: input, shape index: {}]
  %s2 = inlined_call_operand.vmem [shape: f32[32,1], index: 2, kind: output, shape index: {}]
  %s3 = sld [smem:[#allocation0]]
  $region41: #{ssi_ddi_block.6} parent=0
    _
  %s5 = ssub.s32 1, %s3
  %s6 = scalar_select 0, %s5, %s3
  loop: start=0, step=1, limit=6
  $region2: #{ssi_ddi_block.6} parent=0 // loop_pre_header
    _
  $region3: #{ssi_ddi_block.6} parent=0 // loop_header
    %s8 = sphi 0, %s12
    %p9 = scmp.ge.s32.totalorder %s8, 6
    %s16 = sphi 0, %s16
    %s18 = sphi 0, %s16
    %s19 = sphi 0, %s18
    %s33 = sphi 0, %s19
    %s39 = sphi 0, %s41
    %s42 = sphi 0, %s39
    %s43 = sphi 0, %s42
    %s59 = sphi 0, %s43
    %s65 = sphi 0, %s67
    %s68 = sphi 0, %s65
    %s69 = sphi 0, %s68
    %s85 = sphi 0, %s69
  $region4: #{ssi_ddi_block.6} parent=0 // loop_header_branch
    %11 = sbr.rel (%p9) target = $region8
  $region5: #{ssi_ddi_block.6} parent=0 // loop_body
    %s13 = ssub.s32 %s8, 1
    %s14 = ssub.s32 %s8, 2
    %s15 = sadd.s32 %s8, 1
    %s17 = sadd.s32 %s16, 1
    %p20 = scmp.eq.s32.totalorder %s8, 3
    %p21 = scmp.ne.s32.totalorder %s16, %s18
    %p22 = scmp.eq.s32.totalorder %s8, 0
    %p23 = por %p21, %p22
    %p24 = scmp.ne.s32.totalorder %s16, %s18
    %p25 = scmp.eq.s32.totalorder %s13, 3
    %p26 = por %p24, %p25
    %p27 = scmp.ne.s32.totalorder %s18, %s19
    %p28 = scmp.eq.s32.totalorder %s13, 0
    %p29 = por %p27, %p28
    %p30 = scmp.ne.s32.totalorder %s18, %s19
    %p31 = scmp.eq.s32.totalorder %s14, 3
    %p32 = por %p30, %p31
    %p34 = scmp.ne.s32.totalorder %s19, %s33
    %p35 = scmp.eq.s32.totalorder %s14, 0
    %p36 = por %p34, %p35
    %s37 = ssub.s32 %s8, %s15
    %p38 = scmp.eq.s32.totalorder %s37, 0
    %s40 = sadd.s32 %s39, 1
    %s41 = scalar_select %p38, %s39, %s40
    %p44 = pneg %p38
    %p45 = scmp.eq.s32.totalorder %s8, 3
    %p46 = por %p44, %p45
    %p47 = scmp.ne.s32.totalorder %s39, %s42
    %p48 = scmp.eq.s32.totalorder %s8, 0
    %p49 = por %p47, %p48
    %p50 = scmp.ne.s32.totalorder %s39, %s42
    %p51 = scmp.eq.s32.totalorder %s13, 3
    %p52 = por %p50, %p51
    %p53 = scmp.ne.s32.totalorder %s42, %s43
    %p54 = scmp.eq.s32.totalorder %s13, 0
    %p55 = por %p53, %p54
    %p56 = scmp.ne.s32.totalorder %s42, %s43
    %p57 = scmp.eq.s32.totalorder %s14, 3
    %p58 = por %p56, %p57
    %p60 = scmp.ne.s32.totalorder %s43, %s59
    %p61 = scmp.eq.s32.totalorder %s14, 0
    %p62 = por %p60, %p61
    %s63 = ssub.s32 %s8, %s15
    %p64 = scmp.eq.s32.totalorder %s63, 0
    %s66 = sadd.s32 %s65, 1
    %s67 = scalar_select %p64, %s65, %s66
    %p70 = pneg %p64
    %p71 = scmp.eq.s32.totalorder %s8, 3
    %p72 = por %p70, %p71
    %p73 = scmp.ne.s32.totalorder %s65, %s68
    %p74 = scmp.eq.s32.totalorder %s8, 0
    %p75 = por %p73, %p74
    %p76 = scmp.ne.s32.totalorder %s65, %s68
    %p77 = scmp.eq.s32.totalorder %s13, 3
    %p78 = por %p76, %p77
    %p79 = scmp.ne.s32.totalorder %s68, %s69
    %p80 = scmp.eq.s32.totalorder %s13, 0
    %p81 = por %p79, %p80
    %p82 = scmp.ne.s32.totalorder %s68, %s69
    %p83 = scmp.eq.s32.totalorder %s14, 3
    %p84 = por %p82, %p83
    %p86 = scmp.ne.s32.totalorder %s69, %s85
    %p87 = scmp.eq.s32.totalorder %s14, 0
    %p88 = por %p86, %p87
    %p89 = scmp.le.s32.totalorder 1, %s8
    %p90 = scmp.lt.s32.totalorder %s8, 5
    %p91 = pnand %p89, %p90
    %p92 = pneg %p91
    // Predicated region
    $region9: #{ssi_ddi_block.6} parent=5 // pred_check
      _
    $region10: #{ssi_ddi_block.6} parent=5 // pred_check_branch
      %94 = sbr.rel (%p91) target = $region12
    $region11: #{ssi_ddi_block.6} parent=5 // pred_region
      %s95 = ssub.s32 %s8, 1
      // Predicated region
      $region13: #{ssi_ddi_block.6} parent=11 // pred_check
        %p96 = pneg %p29
      $region14: #{ssi_ddi_block.6} parent=11 // pred_check_branch
        %98 = sbr.rel (%p96) target = $region16
      $region15: #{ssi_ddi_block.6} parent=11 // pred_region
        _
      $region16: #{ssi_ddi_block.6} parent=11 // pred_fallthru
        _
    $region12: #{ssi_ddi_block.6} parent=5 // pred_fallthru
      _
    %p99 = scmp.lt.s32.totalorder %s8, 4
    // Predicated region
    $region17: #{ssi_ddi_block.6} parent=5 // pred_check
      %p100 = pneg %p99
    $region18: #{ssi_ddi_block.6} parent=5 // pred_check_branch
      %102 = sbr.rel (%p100) target = $region20
    $region19: #{ssi_ddi_block.6} parent=5 // pred_region
      // Predicated region
      $region21: #{ssi_ddi_block.6} parent=19 // pred_check
        %p103 = pneg %p49
      $region22: #{ssi_ddi_block.6} parent=19 // pred_check_branch
        %105 = sbr.rel (%p103) target = $region24
      $region23: #{ssi_ddi_block.6} parent=19 // pred_region
        %p106 = scmp.lt.s32.totalorder %s8, 3
        %s107 = scalar_select %p106, %s8, 3
        %s108 = smul.addr %s107, 4
        %s109 = scalar_lea.vmem %s1, %s108
      $region24: #{ssi_ddi_block.6} parent=19 // pred_fallthru
        _
    $region20: #{ssi_ddi_block.6} parent=5 // pred_fallthru
      _
    %p110 = scmp.le.s32.totalorder 1, %s8
    %p111 = scmp.lt.s32.totalorder %s8, 5
    %p112 = pnand %p110, %p111
    %p113 = pneg %p112
    // Predicated region
    $region25: #{ssi_ddi_block.6} parent=5 // pred_check
      _
    $region26: #{ssi_ddi_block.6} parent=5 // pred_check_branch
      %115 = sbr.rel (%p112) target = $region28
    $region27: #{ssi_ddi_block.6} parent=5 // pred_region
      %s116 = ssub.s32 %s8, 1
      %p117 = pneg %p29
      %p118 = pneg %p26
      %p119 = scmp.lt.s32.totalorder %s13, 3
      %s120 = scalar_select %p119, %s13, 3
      %s121 = smul.addr %s120, 4
      %s122 = scalar_lea.vmem %s1, %s121
      %p123 = pneg %p55
      %p124 = pneg %p52
      %p125 = pneg %p81
      %p126 = pneg %p78
      %p127 = scmp.lt.s32.totalorder %s13, 3
      %s128 = scalar_select %p127, %s13, 3
      %s129 = smul.addr %s128, 8
      %s130 = scalar_lea.vmem %s2, %s129
      %p131 = scmp.lt.s32.totalorder %s13, 3
      %s132 = scalar_select %p131, %s13, 3
      %s133 = smul.addr %s132, 4
      %s134 = scalar_lea.vmem %s1, %s133
      %p135 = scmp.lt.s32.totalorder %s13, 3
      %s136 = scalar_select %p135, %s13, 3
      %s137 = smul.addr %s136, 8
      %s138 = scalar_lea.vmem %s2, %s137
      %s140 = smul.u32 %s13, 8
      %v141 = vld [vmem:[%s0] sm:$0xff]
      %v142 = vld [vmem:[%s0 + $0x8] sm:$0xff]
      %v143 = vld [vmem:[%s0 + $0x10] sm:$0xff]
      %v144 = vld [vmem:[%s0 + $0x18] sm:$0xff]
      %v145 = vld [vmem:[%s134] sm:$0xf]
      %v146 = vpack.c.bf16 %v142, %v141
      %v147 = vpack.c.bf16 %v144, %v143
      %vm148 = vcmask 261120
      %v150 = vsel %vm148, %v145, 0
      %152 = vmatprep.subr.bf16.mxu0 0
      %153 = vmatpush1.bf16.msra.mxu0 0
      %154 = vmatprep.subr.bf16.mxu0 0
      %155 = vmatpush1.bf16.msra.mxu0 0
      %156 = vmatprep.subr.bf16.mxu0 0
      %157 = vmatpush1.bf16.msra.mxu0 0
      %158 = vmatprep.subr.bf16.mxu0 0
      %159 = vmatpush1.bf16.msra.mxu0 0
      %160 = vmatprep.subr.bf16.mxu0 0
      %161 = vmatpush1.bf16.msra.mxu0 0
      %162 = vmatprep.subr.bf16.mxu0 0
      %163 = vmatpush1.bf16.msra.mxu0 0
      %164 = vmatprep.subr.bf16.mxu0 0
      %165 = vmatpush1.bf16.msra.mxu0 %v147
      %166 = vmatprep.subr.bf16.mxu0 0
      %167 = vmatpush1.bf16.msra.mxu0 %v146
      %168 = vmatprep.subr.bf16.mxu0 0
      %169 = vmatpush2.bf16.msra.mxu0 0
      %170 = vmatprep.subr.bf16.mxu0 0
      %171 = vmatpush2.bf16.msra.mxu0 0
      %172 = vmatprep.subr.bf16.mxu0 0
      %173 = vmatpush2.bf16.msra.mxu0 0
      %174 = vmatprep.subr.bf16.mxu0 0
      %175 = vmatpush2.bf16.msra.mxu0 0
      %176 = vmatprep.subr.bf16.mxu0 0
      %177 = vmatpush2.bf16.msra.mxu0 0
      %178 = vmatprep.subr.bf16.mxu0 0
      %179 = vmatpush2.bf16.msra.mxu0 0
      %180 = vmatprep.subr.bf16.mxu0 0
      %181 = vmatpush2.bf16.msra.mxu0 0
      %182 = vmatprep.subr.bf16.mxu0 0
      %183 = vmatpush2.bf16.msra.mxu0 0
      %184 = vmatprep.mubr.bf16.mxu0 0
      %185 = vmatmul.mubr.bf16.gmra.mxu0 %v150
      %v186 = vpop.f32.mrf.mxu0
      %v187 = vadd.f32 0.0, %v186
      %v188 = vpop.f32.mrf.mxu0
      %v189 = vpop.f32.mrf.mxu0
      %v190 = vpop.f32.mrf.mxu0
      %191 = vdwg.mxu0
      %s192 = scalar_lea.vmem %s0, %s140
      %v193 = vld [vmem:[%s192] sm:$0xff]
      %v194 = vsub.f32 %v187, %v193
      %196 = vrot.lane.b32.xlu0 %v193, 127
      %v197 = vpop.permute.xlu0 %196
      %v199 = vadd.f32 %v194, %v197
      %vm200 = vcmask 7168
      %201 = vst.msk [vmem:[%s138] sm:$0xff] %vm200, %v199
      %p202 = scmp.lt.s32.totalorder %s13, 3
      %s203 = scalar_select %p202, %s13, 3
      %s204 = smul.addr %s203, 8
      %s205 = scalar_lea.vmem %s2, %s204
      // Predicated region
      $region29: #{ssi_ddi_block.6} parent=27 // pred_check
        %p206 = pneg %p78
      $region30: #{ssi_ddi_block.6} parent=27 // pred_check_branch
        %208 = sbr.rel (%p206) target = $region32
      $region31: #{ssi_ddi_block.6} parent=27 // pred_region
        _
      $region32: #{ssi_ddi_block.6} parent=27 // pred_fallthru
        _
    $region28: #{ssi_ddi_block.6} parent=5 // pred_fallthru
      _
    %p209 = scmp.le.s32.totalorder 2, %s8
    // Predicated region
    $region33: #{ssi_ddi_block.6} parent=5 // pred_check
      %p210 = pneg %p209
    $region34: #{ssi_ddi_block.6} parent=5 // pred_check_branch
      %212 = sbr.rel (%p210) target = $region36
    $region35: #{ssi_ddi_block.6} parent=5 // pred_region
      %s213 = ssub.s32 %s8, 2
      // Predicated region
      $region37: #{ssi_ddi_block.6} parent=35 // pred_check
        %p214 = pneg %p84
      $region38: #{ssi_ddi_block.6} parent=35 // pred_check_branch
        %216 = sbr.rel (%p214) target = $region40
      $region39: #{ssi_ddi_block.6} parent=35 // pred_region
        %p217 = scmp.lt.s32.totalorder %s14, 3
        %s218 = scalar_select %p217, %s14, 3
        %s219 = smul.addr %s218, 8
        %s220 = scalar_lea.vmem %s2, %s219
      $region40: #{ssi_ddi_block.6} parent=35 // pred_fallthru
        _
    $region36: #{ssi_ddi_block.6} parent=5 // pred_fallthru
      _
  $region6: #{ssi_ddi_block.6} parent=0 // loop_footer
    %s12 = sadd.s32 1, %s8
  $region7: #{ssi_ddi_block.6} parent=0 // loop_footer_branch
    %7 = sbr.rel target = $region3
  $region8: #{ssi_ddi_block.6} parent=0 // loop_exit
    _

// kernel: ssi_ddi_block.5
$region0: #{ssi_ddi_block.5}
  #allocation0 [shape = 'u32[]', space=smem, size = 0x4, offset = 0x4, fixed_abs, tag = 'smem constant byte address 0x4 - core index']
  #allocation1 [shape = 'u32[144,128]{1,0:T(1,128)}', space=vmem, size = 0x12000, scoped, tag = 'internal scratch']
  %s0 = inlined_call_operand.vmem [shape: bf16[32,32], index: 0, kind: input, shape index: {}]
  %s1 = inlined_call_operand.vmem [shape: f32[2,32], index: 1, kind: input, shape index: {}]
  %s2 = inlined_call_operand.vmem [shape: f32[32,2], index: 2, kind: input, shape index: {}]
  %s3 = inlined_call_operand.vmem [shape: f32[1,32], index: 3, kind: input, shape index: {}]
  %s4 = inlined_call_operand.vmem [shape: f32[32,2], index: 4, kind: input, shape index: {}]
  %s5 = inlined_call_operand.vmem [shape: bf16[32,32], index: 5, kind: input, shape index: {}]
  %s6 = inlined_call_operand.vmem [shape: f32[32,32], index: 6, kind: output, shape index: {0}]
  %s7 = inlined_call_operand.vmem [shape: f32[32,2], index: 7, kind: output, shape index: {1}]
  %8 = xla_tuple %s6, %s7
  %s9 = sld [smem:[#allocation0]]
  $region65: #{ssi_ddi_block.5} parent=0
    _
  %s11 = ssub.s32 1, %s9
  %s12 = scalar_select 0, %s11, %s9
  loop: start=0, step=1, limit=6
  $region2: #{ssi_ddi_block.5} parent=0 // loop_pre_header
    _
  $region3: #{ssi_ddi_block.5} parent=0 // loop_header
    %s14 = sphi 0, %s18
    %p15 = scmp.ge.s32.totalorder %s14, 6
    %s22 = sphi 0, %s22
    %s24 = sphi 0, %s22
    %s25 = sphi 0, %s24
    %s39 = sphi 0, %s25
    %s43 = sphi 0, %s43
    %s45 = sphi 0, %s43
    %s46 = sphi 0, %s45
    %s60 = sphi 0, %s46
    %s66 = sphi 0, %s68
    %s69 = sphi 0, %s66
    %s70 = sphi 0, %s69
    %s86 = sphi 0, %s70
    %s90 = sphi 0, %s90
    %s92 = sphi 0, %s90
    %s93 = sphi 0, %s92
    %s107 = sphi 0, %s93
    %s111 = sphi 0, %s111
    %s113 = sphi 0, %s111
    %s114 = sphi 0, %s113
    %s128 = sphi 0, %s114
    %s134 = sphi 0, %s136
    %s137 = sphi 0, %s134
    %s138 = sphi 0, %s137
    %s154 = sphi 0, %s138
    %s160 = sphi 0, %s162
    %s163 = sphi 0, %s160
    %s164 = sphi 0, %s163
    %s180 = sphi 0, %s164
    %s186 = sphi 0, %s188
    %s189 = sphi 0, %s186
    %s190 = sphi 0, %s189
    %s206 = sphi 0, %s190
  $region4: #{ssi_ddi_block.5} parent=0 // loop_header_branch
    %17 = sbr.rel (%p15) target = $region8
  $region5: #{ssi_ddi_block.5} parent=0 // loop_body
    %s19 = ssub.s32 %s14, 1
    %s20 = ssub.s32 %s14, 2
    %s21 = sadd.s32 %s14, 1
    %s23 = sadd.s32 %s22, 1
    %p26 = scmp.eq.s32.totalorder %s14, 3
    %p27 = scmp.ne.s32.totalorder %s22, %s24
    %p28 = scmp.eq.s32.totalorder %s14, 0
    %p29 = por %p27, %p28
    %p30 = scmp.ne.s32.totalorder %s22, %s24
    %p31 = scmp.eq.s32.totalorder %s19, 3
    %p32 = por %p30, %p31
    %p33 = scmp.ne.s32.totalorder %s24, %s25
    %p34 = scmp.eq.s32.totalorder %s19, 0
    %p35 = por %p33, %p34
    %p36 = scmp.ne.s32.totalorder %s24, %s25
    %p37 = scmp.eq.s32.totalorder %s20, 3
    %p38 = por %p36, %p37
    %p40 = scmp.ne.s32.totalorder %s25, %s39
    %p41 = scmp.eq.s32.totalorder %s20, 0
    %p42 = por %p40, %p41
    %s44 = sadd.s32 %s43, 1
    %p47 = scmp.eq.s32.totalorder %s14, 3
    %p48 = scmp.ne.s32.totalorder %s43, %s45
    %p49 = scmp.eq.s32.totalorder %s14, 0
    %p50 = por %p48, %p49
    %p51 = scmp.ne.s32.totalorder %s43, %s45
    %p52 = scmp.eq.s32.totalorder %s19, 3
    %p53 = por %p51, %p52
    %p54 = scmp.ne.s32.totalorder %s45, %s46
    %p55 = scmp.eq.s32.totalorder %s19, 0
    %p56 = por %p54, %p55
    %p57 = scmp.ne.s32.totalorder %s45, %s46
    %p58 = scmp.eq.s32.totalorder %s20, 3
    %p59 = por %p57, %p58
    %p61 = scmp.ne.s32.totalorder %s46, %s60
    %p62 = scmp.eq.s32.totalorder %s20, 0
    %p63 = por %p61, %p62
    %s64 = ssub.s32 %s14, %s21
    %p65 = scmp.eq.s32.totalorder %s64, 0
    %s67 = sadd.s32 %s66, 1
    %s68 = scalar_select %p65, %s66, %s67
    %p71 = pneg %p65
    %p72 = scmp.eq.s32.totalorder %s14, 3
    %p73 = por %p71, %p72
    %p74 = scmp.ne.s32.totalorder %s66, %s69
    %p75 = scmp.eq.s32.totalorder %s14, 0
    %p76 = por %p74, %p75
    %p77 = scmp.ne.s32.totalorder %s66, %s69
    %p78 = scmp.eq.s32.totalorder %s19, 3
    %p79 = por %p77, %p78
    %p80 = scmp.ne.s32.totalorder %s69, %s70
    %p81 = scmp.eq.s32.totalorder %s19, 0
    %p82 = por %p80, %p81
    %p83 = scmp.ne.s32.totalorder %s69, %s70
    %p84 = scmp.eq.s32.totalorder %s20, 3
    %p85 = por %p83, %p84
    %p87 = scmp.ne.s32.totalorder %s70, %s86
    %p88 = scmp.eq.s32.totalorder %s20, 0
    %p89 = por %p87, %p88
    %s91 = sadd.s32 %s90, 1
    %p94 = scmp.eq.s32.totalorder %s14, 3
    %p95 = scmp.ne.s32.totalorder %s90, %s92
    %p96 = scmp.eq.s32.totalorder %s14, 0
    %p97 = por %p95, %p96
    %p98 = scmp.ne.s32.totalorder %s90, %s92
    %p99 = scmp.eq.s32.totalorder %s19, 3
    %p100 = por %p98, %p99
    %p101 = scmp.ne.s32.totalorder %s92, %s93
    %p102 = scmp.eq.s32.totalorder %s19, 0
    %p103 = por %p101, %p102
    %p104 = scmp.ne.s32.totalorder %s92, %s93
    %p105 = scmp.eq.s32.totalorder %s20, 3
    %p106 = por %p104, %p105
    %p108 = scmp.ne.s32.totalorder %s93, %s107
    %p109 = scmp.eq.s32.totalorder %s20, 0
    %p110 = por %p108, %p109
    %s112 = sadd.s32 %s111, 1
    %p115 = scmp.eq.s32.totalorder %s14, 3
    %p116 = scmp.ne.s32.totalorder %s111, %s113
    %p117 = scmp.eq.s32.totalorder %s14, 0
    %p118 = por %p116, %p117
    %p119 = scmp.ne.s32.totalorder %s111, %s113
    %p120 = scmp.eq.s32.totalorder %s19, 3
    %p121 = por %p119, %p120
    %p122 = scmp.ne.s32.totalorder %s113, %s114
    %p123 = scmp.eq.s32.totalorder %s19, 0
    %p124 = por %p122, %p123
    %p125 = scmp.ne.s32.totalorder %s113, %s114
    %p126 = scmp.eq.s32.totalorder %s20, 3
    %p127 = por %p125, %p126
    %p129 = scmp.ne.s32.totalorder %s114, %s128
    %p130 = scmp.eq.s32.totalorder %s20, 0
    %p131 = por %p129, %p130
    %s132 = ssub.s32 %s14, %s21
    %p133 = scmp.eq.s32.totalorder %s132, 0
    %s135 = sadd.s32 %s134, 1
    %s136 = scalar_select %p133, %s134, %s135
    %p139 = pneg %p133
    %p140 = scmp.eq.s32.totalorder %s14, 3
    %p141 = por %p139, %p140
    %p142 = scmp.ne.s32.totalorder %s134, %s137
    %p143 = scmp.eq.s32.totalorder %s14, 0
    %p144 = por %p142, %p143
    %p145 = scmp.ne.s32.totalorder %s134, %s137
    %p146 = scmp.eq.s32.totalorder %s19, 3
    %p147 = por %p145, %p146
    %p148 = scmp.ne.s32.totalorder %s137, %s138
    %p149 = scmp.eq.s32.totalorder %s19, 0
    %p150 = por %p148, %p149
    %p151 = scmp.ne.s32.totalorder %s137, %s138
    %p152 = scmp.eq.s32.totalorder %s20, 3
    %p153 = por %p151, %p152
    %p155 = scmp.ne.s32.totalorder %s138, %s154
    %p156 = scmp.eq.s32.totalorder %s20, 0
    %p157 = por %p155, %p156
    %s158 = ssub.s32 %s14, %s21
    %p159 = scmp.eq.s32.totalorder %s158, 0
    %s161 = sadd.s32 %s160, 1
    %s162 = scalar_select %p159, %s160, %s161
    %p165 = pneg %p159
    %p166 = scmp.eq.s32.totalorder %s14, 3
    %p167 = por %p165, %p166
    %p168 = scmp.ne.s32.totalorder %s160, %s163
    %p169 = scmp.eq.s32.totalorder %s14, 0
    %p170 = por %p168, %p169
    %p171 = scmp.ne.s32.totalorder %s160, %s163
    %p172 = scmp.eq.s32.totalorder %s19, 3
    %p173 = por %p171, %p172
    %p174 = scmp.ne.s32.totalorder %s163, %s164
    %p175 = scmp.eq.s32.totalorder %s19, 0
    %p176 = por %p174, %p175
    %p177 = scmp.ne.s32.totalorder %s163, %s164
    %p178 = scmp.eq.s32.totalorder %s20, 3
    %p179 = por %p177, %p178
    %p181 = scmp.ne.s32.totalorder %s164, %s180
    %p182 = scmp.eq.s32.totalorder %s20, 0
    %p183 = por %p181, %p182
    %s184 = ssub.s32 %s14, %s21
    %p185 = scmp.eq.s32.totalorder %s184, 0
    %s187 = sadd.s32 %s186, 1
    %s188 = scalar_select %p185, %s186, %s187
    %p191 = pneg %p185
    %p192 = scmp.eq.s32.totalorder %s14, 3
    %p193 = por %p191, %p192
    %p194 = scmp.ne.s32.totalorder %s186, %s189
    %p195 = scmp.eq.s32.totalorder %s14, 0
    %p196 = por %p194, %p195
    %p197 = scmp.ne.s32.totalorder %s186, %s189
    %p198 = scmp.eq.s32.totalorder %s19, 3
    %p199 = por %p197, %p198
    %p200 = scmp.ne.s32.totalorder %s189, %s190
    %p201 = scmp.eq.s32.totalorder %s19, 0
    %p202 = por %p200, %p201
    %p203 = scmp.ne.s32.totalorder %s189, %s190
    %p204 = scmp.eq.s32.totalorder %s20, 3
    %p205 = por %p203, %p204
    %p207 = scmp.ne.s32.totalorder %s190, %s206
    %p208 = scmp.eq.s32.totalorder %s20, 0
    %p209 = por %p207, %p208
    %p210 = scmp.le.s32.totalorder 1, %s14
    %p211 = scmp.lt.s32.totalorder %s14, 5
    %p212 = pnand %p210, %p211
    %p213 = pneg %p212
    // Predicated region
    $region9: #{ssi_ddi_block.5} parent=5 // pred_check
      _
    $region10: #{ssi_ddi_block.5} parent=5 // pred_check_branch
      %215 = sbr.rel (%p212) target = $region12
    $region11: #{ssi_ddi_block.5} parent=5 // pred_region
      %s216 = ssub.s32 %s14, 1
      // Predicated region
      $region13: #{ssi_ddi_block.5} parent=11 // pred_check
        %p217 = pneg %p35
      $region14: #{ssi_ddi_block.5} parent=11 // pred_check_branch
        %219 = sbr.rel (%p217) target = $region16
      $region15: #{ssi_ddi_block.5} parent=11 // pred_region
        _
      $region16: #{ssi_ddi_block.5} parent=11 // pred_fallthru
        _
      // Predicated region
      $region17: #{ssi_ddi_block.5} parent=11 // pred_check
        %p220 = pneg %p56
      $region18: #{ssi_ddi_block.5} parent=11 // pred_check_branch
        %222 = sbr.rel (%p220) target = $region20
      $region19: #{ssi_ddi_block.5} parent=11 // pred_region
        _
      $region20: #{ssi_ddi_block.5} parent=11 // pred_fallthru
        _
      // Predicated region
      $region21: #{ssi_ddi_block.5} parent=11 // pred_check
        %p223 = pneg %p103
      $region22: #{ssi_ddi_block.5} parent=11 // pred_check_branch
        %225 = sbr.rel (%p223) target = $region24
      $region23: #{ssi_ddi_block.5} parent=11 // pred_region
        _
      $region24: #{ssi_ddi_block.5} parent=11 // pred_fallthru
        _
      // Predicated region
      $region25: #{ssi_ddi_block.5} parent=11 // pred_check
        %p226 = pneg %p124
      $region26: #{ssi_ddi_block.5} parent=11 // pred_check_branch
        %228 = sbr.rel (%p226) target = $region28
      $region27: #{ssi_ddi_block.5} parent=11 // pred_region
        _
      $region28: #{ssi_ddi_block.5} parent=11 // pred_fallthru
        _
    $region12: #{ssi_ddi_block.5} parent=5 // pred_fallthru
      _
    %p229 = scmp.lt.s32.totalorder %s14, 4
    // Predicated region
    $region29: #{ssi_ddi_block.5} parent=5 // pred_check
      %p230 = pneg %p229
    $region30: #{ssi_ddi_block.5} parent=5 // pred_check_branch
      %232 = sbr.rel (%p230) target = $region32
    $region31: #{ssi_ddi_block.5} parent=5 // pred_region
      // Predicated region
      $region33: #{ssi_ddi_block.5} parent=31 // pred_check
        %p233 = pneg %p76
      $region34: #{ssi_ddi_block.5} parent=31 // pred_check_branch
        %235 = sbr.rel (%p233) target = $region36
      $region35: #{ssi_ddi_block.5} parent=31 // pred_region
        %p236 = scmp.lt.s32.totalorder %s14, 3
        %s237 = scalar_select %p236, %s14, 3
        %s238 = smul.addr %s237, 8
        %s239 = scalar_lea.vmem %s2, %s238
      $region36: #{ssi_ddi_block.5} parent=31 // pred_fallthru
        _
      // Predicated region
      $region37: #{ssi_ddi_block.5} parent=31 // pred_check
        %p240 = pneg %p144
      $region38: #{ssi_ddi_block.5} parent=31 // pred_check_branch
        %242 = sbr.rel (%p240) target = $region40
      $region39: #{ssi_ddi_block.5} parent=31 // pred_region
        %p243 = scmp.lt.s32.totalorder %s14, 3
        %s244 = scalar_select %p243, %s14, 3
        %s245 = smul.addr %s244, 4
        %s246 = scalar_lea.vmem %s5, %s245
      $region40: #{ssi_ddi_block.5} parent=31 // pred_fallthru
        _
    $region32: #{ssi_ddi_block.5} parent=5 // pred_fallthru
      _
    %p247 = scmp.le.s32.totalorder 1, %s14
    %p248 = scmp.lt.s32.totalorder %s14, 5
    %p249 = pnand %p247, %p248
    %p250 = pneg %p249
    // Predicated region
    $region41: #{ssi_ddi_block.5} parent=5 // pred_check
      _
    $region42: #{ssi_ddi_block.5} parent=5 // pred_check_branch
      %252 = sbr.rel (%p249) target = $region44
    $region43: #{ssi_ddi_block.5} parent=5 // pred_region
      %s253 = ssub.s32 %s14, 1
      %p254 = pneg %p35
      %p255 = pneg %p32
      %p256 = pneg %p56
      %p257 = pneg %p53
      %p258 = scmp.lt.s32.totalorder %s19, 3
      %s259 = scalar_select %p258, %s19, 3
      %s260 = smul.addr %s259, 8
      %s261 = scalar_lea.vmem %s2, %s260
      %p262 = pneg %p82
      %p263 = pneg %p79
      %p264 = pneg %p103
      %p265 = pneg %p100
      %p266 = pneg %p124
      %p267 = pneg %p121
      %p268 = scmp.lt.s32.totalorder %s19, 3
      %s269 = scalar_select %p268, %s19, 3
      %s270 = smul.addr %s269, 4
      %s271 = scalar_lea.vmem %s5, %s270
      %p272 = pneg %p150
      %p273 = pneg %p147
      %p274 = pneg %p176
      %p275 = pneg %p173
      %p276 = scmp.lt.s32.totalorder %s19, 3
      %s277 = scalar_select %p276, %s19, 3
      %s278 = smul.addr %s277, 8
      %s279 = scalar_lea.vmem %s6, %s278
      %p280 = pneg %p202
      %p281 = pneg %p199
      %p282 = scmp.lt.s32.totalorder %s19, 3
      %s283 = scalar_select %p282, %s19, 3
      %s284 = smul.addr %s283, 8
      %s285 = scalar_lea.vmem %s7, %s284
      %p286 = scmp.lt.s32.totalorder %s19, 3
      %s287 = scalar_select %p286, %s19, 3
      %s288 = smul.addr %s287, 8
      %s289 = scalar_lea.vmem %s2, %s288
      %p290 = scmp.lt.s32.totalorder %s19, 3
      %s291 = scalar_select %p290, %s19, 3
      %s292 = smul.addr %s291, 4
      %s293 = scalar_lea.vmem %s5, %s292
      %p294 = scmp.lt.s32.totalorder %s19, 3
      %s295 = scalar_select %p294, %s19, 3
      %s296 = smul.addr %s295, 8
      %s297 = scalar_lea.vmem %s6, %s296
      %p298 = scmp.lt.s32.totalorder %s19, 3
      %s299 = scalar_select %p298, %s19, 3
      %s300 = smul.addr %s299, 8
      %s301 = scalar_lea.vmem %s7, %s300
      %v305 = vld [vmem:[%s293] sm:$0xf]
      %vm306 = vcmp.gt.bf16.partialorder %v305, 0
      %v307 = vld [vmem:[%s289] sm:$0xff]
      %v308 = vld [vmem:[%s1] sm:$0x1]
      %310 = vset.pattern.permute.xlu0 0
      %311 = vperm.xlu0 %310, %v307
      %v312 = vpop.permute.xlu0 %311
      %v314 = vlaneseq
      %v315 = vshrl.u32 %v314, 7
      %v316 = vsub.s32 0, %v315
      %v317 = vrot.slane %v308, %v316
      %v318 = vadd.f32 %v312, %v317
      %vm319 = vcmp.gt.f32.partialorder %v318, 0.0
      %v320 = vmul.f32 %v318, 0.2
      %v321 = vsel %vm319, %v318, %v320
      %v322 = vsel %vm306, 65537, 0
      %v323 = vunpack.c.l.b16 %v322
      %vm324 = vcmp.ne.s32.totalorder %v323, 0
      %v325 = vsel %vm324, %v321, -1e+30
      %vm326 = vcmask 261120
      %v327 = vsel %vm326, %v325, -inf
      %328 = vmax.xlane.f32.xlu0 %v327
      %v329 = vpop.xlane.xlu0 %328
      %v330 = vsub.f32 %v325, %v329
      %v331 = vmul.f32 %v330, 1.442695
      %v332 = vpow.pop %v331
      %v333 = vsel %vm326, %v332, 0.0
      %334 = vadd.xlane.f32.xlu0 %v333
      %v335 = vpop.xlane.xlu0 %334
      %v336 = vrcp.pop %v335
      %v337 = vmul.f32 %v332, %v336
      %v338 = vpack.c.bf16 %v337, %v337
      %v339 = vld [vmem:[%s0] sm:$0xf]
      %v340 = vld [vmem:[%s0 + $0x4] sm:$0xf]
      %v341 = vld [vmem:[%s0 + $0x8] sm:$0xf]
      %v342 = vld [vmem:[%s0 + $0xc] sm:$0xf]
      %v347 = vunpack.c.l.b16 %v339
      %v348 = vunpack.c.l.b16 %v340
      %v349 = vunpack.c.l.b16 %v341
      %v350 = vunpack.c.l.b16 %v342
      %v351 = vpack.c.b16 %v348, %v347
      %v352 = vpack.c.b16 %v350, %v349
      %v356 = vsel %vm326, %v338, 0
      %358 = vmatprep.subr.bf16.mxu0 0
      %359 = vmatpush1.bf16.msra.mxu0 0
      %360 = vmatprep.subr.bf16.mxu0 0
      %361 = vmatpush1.bf16.msra.mxu0 0
      %362 = vmatprep.subr.bf16.mxu0 0
      %363 = vmatpush1.bf16.msra.mxu0 0
      %364 = vmatprep.subr.bf16.mxu0 0
      %365 = vmatpush1.bf16.msra.mxu0 0
      %366 = vmatprep.subr.bf16.mxu0 0
      %367 = vmatpush1.bf16.msra.mxu0 0
      %368 = vmatprep.subr.bf16.mxu0 0
      %369 = vmatpush1.bf16.msra.mxu0 0
      %370 = vmatprep.subr.bf16.mxu0 0
      %371 = vmatpush1.bf16.msra.mxu0 %v352
      %372 = vmatprep.subr.bf16.mxu0 0
      %373 = vmatpush1.bf16.msra.mxu0 %v351
      %374 = vmatprep.subr.bf16.mxu0 0
      %375 = vmatpush2.bf16.msra.mxu0 0
      %376 = vmatprep.subr.bf16.mxu0 0
      %377 = vmatpush2.bf16.msra.mxu0 0
      %378 = vmatprep.subr.bf16.mxu0 0
      %379 = vmatpush2.bf16.msra.mxu0 0
      %380 = vmatprep.subr.bf16.mxu0 0
      %381 = vmatpush2.bf16.msra.mxu0 0
      %382 = vmatprep.subr.bf16.mxu0 0
      %383 = vmatpush2.bf16.msra.mxu0 0
      %384 = vmatprep.subr.bf16.mxu0 0
      %385 = vmatpush2.bf16.msra.mxu0 0
      %386 = vmatprep.subr.bf16.mxu0 0
      %387 = vmatpush2.bf16.msra.mxu0 0
      %388 = vmatprep.subr.bf16.mxu0 0
      %389 = vmatpush2.bf16.msra.mxu0 0
      %390 = vmatprep.mubr.bf16.mxu0 0
      %391 = vmatmul.mubr.bf16.gmra.mxu0 %v356
      %v392 = vpop.f32.mrf.mxu0
      %v393 = vadd.f32 0.0, %v392
      %v394 = vpop.f32.mrf.mxu0
      %v395 = vpop.f32.mrf.mxu0
      %v396 = vpop.f32.mrf.mxu0
      %397 = vdwg.mxu0
      %v398 = vld [vmem:[%s1 + $0x1] sm:$0x1]
      %399 = vset.pattern.permute.xlu0 1
      %400 = vperm.xlu0 %399, %v307
      %v401 = vpop.permute.xlu0 %400
      %v403 = vlaneseq
      %v404 = vshrl.u32 %v403, 7
      %v405 = vsub.s32 0, %v404
      %v406 = vrot.slane %v398, %v405
      %v407 = vadd.f32 %v401, %v406
      %vm408 = vcmp.gt.f32.partialorder %v407, 0.0
      %v409 = vmul.f32 %v407, 0.2
      %v410 = vsel %vm408, %v407, %v409
      %v411 = vsel %vm324, %v410, -1e+30
      %v412 = vsel %vm326, %v411, -inf
      %413 = vmax.xlane.f32.xlu0 %v412
      %v414 = vpop.xlane.xlu0 %413
      %v415 = vsub.f32 %v411, %v414
      %v416 = vmul.f32 %v415, 1.442695
      %v417 = vpow.pop %v416
      %v418 = vsel %vm326, %v417, 0.0
      %419 = vadd.xlane.f32.xlu0 %v418
      %v420 = vpop.xlane.xlu0 %419
      %v421 = vrcp.pop %v420
      %v422 = vmul.f32 %v417, %v421
      %v423 = vpack.c.bf16 %v422, %v422
      %424 = vrot.lane.b32.xlu0 %v351, 112
      %v425 = vpop.permute.xlu0 %424
      %426 = vrot.lane.b32.xlu0 %v352, 112
      %v427 = vpop.permute.xlu0 %426
      %v431 = vsel %vm326, %v423, 0
      %433 = vmatprep.subr.bf16.mxu0 0
      %434 = vmatpush1.bf16.msra.mxu0 0
      %435 = vmatprep.subr.bf16.mxu0 0
      %436 = vmatpush1.bf16.msra.mxu0 0
      %437 = vmatprep.subr.bf16.mxu0 0
      %438 = vmatpush1.bf16.msra.mxu0 0
      %439 = vmatprep.subr.bf16.mxu0 0
      %440 = vmatpush1.bf16.msra.mxu0 0
      %441 = vmatprep.subr.bf16.mxu0 0
      %442 = vmatpush1.bf16.msra.mxu0 0
      %443 = vmatprep.subr.bf16.mxu0 0
      %444 = vmatpush1.bf16.msra.mxu0 0
      %445 = vmatprep.subr.bf16.mxu0 0
      %446 = vmatpush1.bf16.msra.mxu0 %v427
      %447 = vmatprep.subr.bf16.mxu0 0
      %448 = vmatpush1.bf16.msra.mxu0 %v425
      %449 = vmatprep.subr.bf16.mxu0 0
      %450 = vmatpush2.bf16.msra.mxu0 0
      %451 = vmatprep.subr.bf16.mxu0 0
      %452 = vmatpush2.bf16.msra.mxu0 0
      %453 = vmatprep.subr.bf16.mxu0 0
      %454 = vmatpush2.bf16.msra.mxu0 0
      %455 = vmatprep.subr.bf16.mxu0 0
      %456 = vmatpush2.bf16.msra.mxu0 0
      %457 = vmatprep.subr.bf16.mxu0 0
      %458 = vmatpush2.bf16.msra.mxu0 0
      %459 = vmatprep.subr.bf16.mxu0 0
      %460 = vmatpush2.bf16.msra.mxu0 0
      %461 = vmatprep.subr.bf16.mxu0 0
      %462 = vmatpush2.bf16.msra.mxu0 0
      %463 = vmatprep.subr.bf16.mxu0 0
      %464 = vmatpush2.bf16.msra.mxu0 0
      %465 = vmatprep.mubr.bf16.mxu0 0
      %466 = vmatmul.mubr.bf16.gmra.mxu0 %v431
      %v467 = vpop.f32.mrf.mxu0
      %v468 = vadd.f32 0.0, %v467
      %v469 = vpop.f32.mrf.mxu0
      %v470 = vpop.f32.mrf.mxu0
      %v471 = vpop.f32.mrf.mxu0
      %472 = vdwg.mxu0
      %474 = vrot.lane.b32.xlu0 %v468, 16
      %v475 = vpop.permute.xlu0 %474
      %vm477 = vcmask 130048
      %v478 = vsel %vm477, %v393, %v475
      %v479 = vld [vmem:[%s3] sm:$0x1]
      %v481 = vlaneseq
      %v482 = vshrl.u32 %v481, 7
      %v483 = vsub.s32 0, %v482
      %v484 = vrot.slane %v479, %v483
      %v486 = vadd.f32 %v478, %v484
      %487 = vst.msk [vmem:[%s297] sm:$0xff] %vm326, %v486
      %v488 = vld [vmem:[%s4] sm:$0xff]
      %v489 = vld [vmem:[%s4 + $0x8] sm:$0xff]
      %v490 = vld [vmem:[%s4 + $0x10] sm:$0xff]
      %v491 = vld [vmem:[%s4 + $0x18] sm:$0xff]
      %v493 = vsel %vm326, %v486, 0
      %495 = vmatprep.subr.mxu0 0.0
      %496 = vmatpush1.msra.mxu0 0.0
      %497 = vmatprep.subr.mxu0 0.0
      %498 = vmatpush1.msra.mxu0 0.0
      %499 = vmatprep.subr.mxu0 0.0
      %500 = vmatpush1.msra.mxu0 0.0
      %501 = vmatprep.subr.mxu0 0.0
      %502 = vmatpush1.msra.mxu0 0.0
      %503 = vmatprep.subr.mxu0 0.0
      %504 = vmatpush1.msra.mxu0 0.0
      %505 = vmatprep.subr.mxu0 0.0
      %506 = vmatpush1.msra.mxu0 0.0
      %507 = vmatprep.subr.mxu0 0.0
      %508 = vmatpush1.msra.mxu0 0.0
      %509 = vmatprep.subr.mxu0 0.0
      %510 = vmatpush1.msra.mxu0 0.0
      %511 = vmatprep.subr.mxu0 0.0
      %512 = vmatpush1.msra.mxu0 0.0
      %513 = vmatprep.subr.mxu0 0.0
      %514 = vmatpush1.msra.mxu0 0.0
      %515 = vmatprep.subr.mxu0 0.0
      %516 = vmatpush1.msra.mxu0 0.0
      %517 = vmatprep.subr.mxu0 0.0
      %518 = vmatpush1.msra.mxu0 0.0
      %519 = vmatprep.subr.mxu0 0.0
      %520 = vmatpush1.msra.mxu0 %v491
      %521 = vmatprep.subr.mxu0 0.0
      %522 = vmatpush1.msra.mxu0 %v490
      %523 = vmatprep.subr.mxu0 0.0
      %524 = vmatpush1.msra.mxu0 %v489
      %525 = vmatprep.subr.mxu0 0.0
      %526 = vmatpush1.msra.mxu0 %v488
      %527 = vmatprep.subr.mxu0 0.0
      %528 = vmatpush2.msra.mxu0 0.0
      %529 = vmatprep.subr.mxu0 0.0
      %530 = vmatpush2.msra.mxu0 0.0
      %531 = vmatprep.subr.mxu0 0.0
      %532 = vmatpush2.msra.mxu0 0.0
      %533 = vmatprep.subr.mxu0 0.0
      %534 = vmatpush2.msra.mxu0 0.0
      %535 = vmatprep.subr.mxu0 0.0
      %536 = vmatpush2.msra.mxu0 0.0
      %537 = vmatprep.subr.mxu0 0.0
      %538 = vmatpush2.msra.mxu0 0.0
      %539 = vmatprep.subr.mxu0 0.0
      %540 = vmatpush2.msra.mxu0 0.0
      %541 = vmatprep.subr.mxu0 0.0
      %542 = vmatpush2.msra.mxu0 0.0
      %543 = vmatprep.subr.mxu0 0.0
      %544 = vmatpush2.msra.mxu0 0.0
      %545 = vmatprep.subr.mxu0 0.0
      %546 = vmatpush2.msra.mxu0 0.0
      %547 = vmatprep.subr.mxu0 0.0
      %548 = vmatpush2.msra.mxu0 0.0
      %549 = vmatprep.subr.mxu0 0.0
      %550 = vmatpush2.msra.mxu0 0.0
      %551 = vmatprep.subr.mxu0 0.0
      %552 = vmatpush2.msra.mxu0 0.0
      %553 = vmatprep.subr.mxu0 0.0
      %554 = vmatpush2.msra.mxu0 0.0
      %555 = vmatprep.subr.mxu0 0.0
      %556 = vmatpush2.msra.mxu0 0.0
      %557 = vmatprep.subr.mxu0 0.0
      %558 = vmatpush2.msra.mxu0 0.0
      %559 = vmatprep.mubr.f32.mxu0 0.0
      %560 = vmatmul.mubr.f32.gmra.mxu0 %v493
      %v561 = vpop.f32.mrf.mxu0
      %v562 = vadd.f32 0.0, %v561
      %v563 = vpop.f32.mrf.mxu0
      %564 = vdwg.mxu0
      %vm565 = vcmask 15360
      %566 = vst.msk [vmem:[%s301] sm:$0xff] %vm565, %v562
      %p567 = scmp.lt.s32.totalorder %s19, 3
      %s568 = scalar_select %p567, %s19, 3
      %s569 = smul.addr %s568, 8
      %s570 = scalar_lea.vmem %s6, %s569
      %p571 = scmp.lt.s32.totalorder %s19, 3
      %s572 = scalar_select %p571, %s19, 3
      %s573 = smul.addr %s572, 8
      %s574 = scalar_lea.vmem %s7, %s573
      // Predicated region
      $region45: #{ssi_ddi_block.5} parent=43 // pred_check
        %p575 = pneg %p173
      $region46: #{ssi_ddi_block.5} parent=43 // pred_check_branch
        %577 = sbr.rel (%p575) target = $region48
      $region47: #{ssi_ddi_block.5} parent=43 // pred_region
        _
      $region48: #{ssi_ddi_block.5} parent=43 // pred_fallthru
        _
      // Predicated region
      $region49: #{ssi_ddi_block.5} parent=43 // pred_check
        %p578 = pneg %p199
      $region50: #{ssi_ddi_block.5} parent=43 // pred_check_branch
        %580 = sbr.rel (%p578) target = $region52
      $region51: #{ssi_ddi_block.5} parent=43 // pred_region
        _
      $region52: #{ssi_ddi_block.5} parent=43 // pred_fallthru
        _
    $region44: #{ssi_ddi_block.5} parent=5 // pred_fallthru
      _
    %p581 = scmp.le.s32.totalorder 2, %s14
    // Predicated region
    $region53: #{ssi_ddi_block.5} parent=5 // pred_check
      %p582 = pneg %p581
    $region54: #{ssi_ddi_block.5} parent=5 // pred_check_branch
      %584 = sbr.rel (%p582) target = $region56
    $region55: #{ssi_ddi_block.5} parent=5 // pred_region
      %s585 = ssub.s32 %s14, 2
      // Predicated region
      $region57: #{ssi_ddi_block.5} parent=55 // pred_check
        %p586 = pneg %p179
      $region58: #{ssi_ddi_block.5} parent=55 // pred_check_branch
        %588 = sbr.rel (%p586) target = $region60
      $region59: #{ssi_ddi_block.5} parent=55 // pred_region
        %p589 = scmp.lt.s32.totalorder %s20, 3
        %s590 = scalar_select %p589, %s20, 3
        %s591 = smul.addr %s590, 8
        %s592 = scalar_lea.vmem %s6, %s591
      $region60: #{ssi_ddi_block.5} parent=55 // pred_fallthru
        _
      // Predicated region
      $region61: #{ssi_ddi_block.5} parent=55 // pred_check
        %p593 = pneg %p205
      $region62: #{ssi_ddi_block.5} parent=55 // pred_check_branch
        %595 = sbr.rel (%p593) target = $region64
      $region63: #{ssi_ddi_block.5} parent=55 // pred_region
        %p596 = scmp.lt.s32.totalorder %s20, 3
        %s597 = scalar_select %p596, %s20, 3
        %s598 = smul.addr %s597, 8
        %s599 = scalar_lea.vmem %s7, %s598
      $region64: #{ssi_ddi_block.5} parent=55 // pred_fallthru
        _
    $region56: #{ssi_ddi_block.5} parent=5 // pred_fallthru
      _
  $region6: #{ssi_ddi_block.5} parent=0 // loop_footer
    %s18 = sadd.s32 1, %s14
  $region7: #{ssi_ddi_block.5} parent=0 // loop_footer_branch
    %13 = sbr.rel target = $region3
  $region8: #{ssi_ddi_block.5} parent=0 // loop_exit
    _

// kernel: ssi_ddi_block.7
$region0: #{ssi_ddi_block.7}
  #allocation0 [shape = 'u32[]', space=smem, size = 0x4, offset = 0x4, fixed_abs, tag = 'smem constant byte address 0x4 - core index']
  #allocation1 [shape = 'u32[144,128]{1,0:T(1,128)}', space=vmem, size = 0x12000, scoped, tag = 'internal scratch']
  %s0 = inlined_call_operand.vmem [shape: f32[32,32], index: 0, kind: input, shape index: {}]
  %s1 = inlined_call_operand.vmem [shape: f32[32,2], index: 1, kind: input, shape index: {}]
  %s2 = inlined_call_operand.vmem [shape: f32[32,1], index: 2, kind: input, shape index: {}]
  %s3 = inlined_call_operand.hbm [shape: f32[2,32], index: 3, kind: output, shape index: {}]
  %s4 = sld [smem:[#allocation0]]
  $region22: #{ssi_ddi_block.7} parent=0
    _
  %s6 = ssub.s32 1, %s4
  %s7 = scalar_select 0, %s6, %s4
  $region1: #{ssi_ddi_block.7} parent=0
    #allocation2 [shape = 'u8[1024]{0}', space=vmem, size = 0x400, scoped, tag = 'output window, operand 0, single buffered']
    #allocation3 [shape = 's32[1]{0}', space=sflag, size = 0x4, scoped, tag = 'scoped memory for ssi_ddi_block.7']
    %8 = vsyncpa [#allocation3], 0
    // Predicated region
    $region2: #{ssi_ddi_block.7} parent=1 // pred_check
      _
    $region3: #{ssi_ddi_block.7} parent=1 // pred_check_branch
      %10 = sbr.rel (0) target = $region5
    $region4: #{ssi_ddi_block.7} parent=1 // pred_region
      _
    $region5: #{ssi_ddi_block.7} parent=1 // pred_fallthru
      _
    // Predicated region
    $region6: #{ssi_ddi_block.7} parent=1 // pred_check
      _
    $region7: #{ssi_ddi_block.7} parent=1 // pred_check_branch
      %12 = sbr.rel (0) target = $region9
    $region8: #{ssi_ddi_block.7} parent=1 // pred_region
      _
    $region9: #{ssi_ddi_block.7} parent=1 // pred_fallthru
      _
    // Predicated region
    $region10: #{ssi_ddi_block.7} parent=1 // pred_check
      _
    $region11: #{ssi_ddi_block.7} parent=1 // pred_check_branch
      %14 = sbr.rel (0) target = $region13
    $region12: #{ssi_ddi_block.7} parent=1 // pred_region
      _
    $region13: #{ssi_ddi_block.7} parent=1 // pred_fallthru
      _
    %v15 = vld [vmem:[%s1] sm:$0xff]
    %v16 = vld [vmem:[%s1 + $0x8] sm:$0xff]
    %v17 = vld [vmem:[%s1 + $0x10] sm:$0xff]
    %v18 = vld [vmem:[%s1 + $0x18] sm:$0xff]
    %vm19 = vcmp.gt.f32.partialorder %v15, 0.0
    %vm20 = vcmp.gt.f32.partialorder %v16, 0.0
    %vm21 = vcmp.gt.f32.partialorder %v17, 0.0
    %vm22 = vcmp.gt.f32.partialorder %v18, 0.0
    %v23 = vld [vmem:[%s2] sm:$0xff]
    %v24 = vld [vmem:[%s2 + $0x8] sm:$0xff]
    %v25 = vld [vmem:[%s2 + $0x10] sm:$0xff]
    %v26 = vld [vmem:[%s2 + $0x18] sm:$0xff]
    %28 = vset.pattern.permute.xlu0 0
    %29 = vperm.xlu0 %28, %v23
    %v30 = vpop.permute.xlu0 %29
    %33 = vset.pattern.permute.xlu0 0
    %34 = vperm.xlu0 %33, %v24
    %v35 = vpop.permute.xlu0 %34
    %38 = vset.pattern.permute.xlu0 0
    %39 = vperm.xlu0 %38, %v25
    %v40 = vpop.permute.xlu0 %39
    %43 = vset.pattern.permute.xlu0 0
    %44 = vperm.xlu0 %43, %v26
    %v45 = vpop.permute.xlu0 %44
    %v47 = vsel %vm19, %v30, -1e+30
    %v48 = vsel %vm20, %v35, -1e+30
    %v49 = vsel %vm21, %v40, -1e+30
    %v50 = vsel %vm22, %v45, -1e+30
    %vm51 = vcmask 15360
    %v52 = vsel %vm51, %v47, -inf
    %v53 = vsel %vm51, %v48, -inf
    %v54 = vsel %vm51, %v49, -inf
    %v55 = vsel %vm51, %v50, -inf
    %v56 = vmax.f32 %v52, %v53
    %v57 = vmax.f32 %v54, %v55
    %v58 = vmax.f32 %v56, %v57
    %v59 = vrot.slane %v58, 4
    %v60 = vmax.f32 %v58, %v59
    %v61 = vrot.slane %v60, 2
    %v62 = vmax.f32 %v60, %v61
    %v63 = vrot.slane %v62, 1
    %v64 = vmax.f32 %v62, %v63
    %v65 = vsub.f32 %v47, %v64
    %v66 = vsub.f32 %v48, %v64
    %v67 = vsub.f32 %v49, %v64
    %v68 = vsub.f32 %v50, %v64
    %v69 = vmul.f32 %v65, 1.442695
    %v70 = vpow.pop %v69
    %v71 = vmul.f32 %v66, 1.442695
    %v72 = vpow.pop %v71
    %v73 = vmul.f32 %v67, 1.442695
    %v74 = vpow.pop %v73
    %v75 = vmul.f32 %v68, 1.442695
    %v76 = vpow.pop %v75
    %v77 = vmul.f32 %v70, %v15
    %v78 = vmul.f32 %v72, %v16
    %v79 = vmul.f32 %v74, %v17
    %v80 = vmul.f32 %v76, %v18
    %v81 = vsel %vm51, %v77, 0.0
    %v82 = vsel %vm51, %v78, 0.0
    %v83 = vadd.f32 %v81, %v82
    %v84 = vsel %vm51, %v79, 0.0
    %v85 = vadd.f32 %v83, %v84
    %v86 = vsel %vm51, %v80, 0.0
    %v87 = vadd.f32 %v85, %v86
    %v88 = vrot.slane %v87, 4
    %v89 = vadd.f32 %v87, %v88
    %v90 = vrot.slane %v89, 2
    %v91 = vadd.f32 %v89, %v90
    %v92 = vrot.slane %v91, 1
    %v93 = vadd.f32 %v91, %v92
    %v94 = vmax.f32 %v93, 1e-09
    %v95 = vrcp.pop %v94
    %v96 = vmul.f32 %v77, %v95
    %v97 = vmul.f32 %v78, %v95
    %v98 = vmul.f32 %v79, %v95
    %v99 = vmul.f32 %v80, %v95
    %v100 = vld [vmem:[%s0] sm:$0xff]
    %v101 = vld [vmem:[%s0 + $0x8] sm:$0xff]
    %v102 = vld [vmem:[%s0 + $0x10] sm:$0xff]
    %v103 = vld [vmem:[%s0 + $0x18] sm:$0xff]
    %v104 = vsel %vm51, %v96, 0.0
    %105 = vadd.xlane.f32.xlu0 %v104
    %v106 = vpop.xlane.xlu0 %105
    %v107 = vsel %vm51, %v97, 0.0
    %108 = vadd.xlane.f32.xlu0 %v107
    %v109 = vpop.xlane.xlu0 %108
    %v110 = vsel %vm51, %v98, 0.0
    %111 = vadd.xlane.f32.xlu0 %v110
    %v112 = vpop.xlane.xlu0 %111
    %v113 = vsel %vm51, %v99, 0.0
    %114 = vadd.xlane.f32.xlu0 %v113
    %v115 = vpop.xlane.xlu0 %114
    %v116 = vmul.f32 %v100, %v106
    %v117 = vmul.f32 %v101, %v109
    %v118 = vmul.f32 %v102, %v112
    %v119 = vmul.f32 %v103, %v115
    %120 = vxpose.xlu0.b32.start [1/16] %v15, 128
    %121 = vxpose.xlu0.b32.cont [2/16] %v16, 128
    %122 = vxpose.xlu0.b32.cont [3/16] %v17, 128
    %123 = vxpose.xlu0.b32.cont [4/16] %v18, 128
    %124 = vxpose.xlu0.b32.cont [5/16] 0.0, 128
    %125 = vxpose.xlu0.b32.cont [6/16] 0.0, 128
    %126 = vxpose.xlu0.b32.cont [7/16] 0.0, 128
    %127 = vxpose.xlu0.b32.cont [8/16] 0.0, 128
    %128 = vxpose.xlu0.b32.cont [9/16] 0.0, 128
    %129 = vxpose.xlu0.b32.cont [10/16] 0.0, 128
    %130 = vxpose.xlu0.b32.cont [11/16] 0.0, 128
    %131 = vxpose.xlu0.b32.cont [12/16] 0.0, 128
    %132 = vxpose.xlu0.b32.cont [13/16] 0.0, 128
    %133 = vxpose.xlu0.b32.cont [14/16] 0.0, 128
    %134 = vxpose.xlu0.b32.cont [15/16] 0.0, 128
    %135 = vxpose.xlu0.b32.end [16/16] 0.0, 128
    %v136 = vpop.trf.xlu0
    %v137 = vpop.trf.xlu0
    %v138 = vpop.trf.xlu0
    %v139 = vpop.trf.xlu0
    %v140 = vpop.trf.xlu0
    %v141 = vpop.trf.xlu0
    %v142 = vpop.trf.xlu0
    %v143 = vpop.trf.xlu0
    %v144 = vpop.trf.xlu0
    %v145 = vpop.trf.xlu0
    %v146 = vpop.trf.xlu0
    %v147 = vpop.trf.xlu0
    %v148 = vpop.trf.xlu0
    %v149 = vpop.trf.xlu0
    %v150 = vpop.trf.xlu0
    %v151 = vpop.trf.xlu0
    %vm152 = vcmask 261120
    %v154 = vsel %vm152, %v136, 0
    %156 = vmatprep.subr.mxu0 0.0
    %157 = vmatpush1.msra.mxu0 0.0
    %158 = vmatprep.subr.mxu0 0.0
    %159 = vmatpush1.msra.mxu0 0.0
    %160 = vmatprep.subr.mxu0 0.0
    %161 = vmatpush1.msra.mxu0 0.0
    %162 = vmatprep.subr.mxu0 0.0
    %163 = vmatpush1.msra.mxu0 0.0
    %164 = vmatprep.subr.mxu0 0.0
    %165 = vmatpush1.msra.mxu0 0.0
    %166 = vmatprep.subr.mxu0 0.0
    %167 = vmatpush1.msra.mxu0 0.0
    %168 = vmatprep.subr.mxu0 0.0
    %169 = vmatpush1.msra.mxu0 0.0
    %170 = vmatprep.subr.mxu0 0.0
    %171 = vmatpush1.msra.mxu0 0.0
    %172 = vmatprep.subr.mxu0 0.0
    %173 = vmatpush1.msra.mxu0 0.0
    %174 = vmatprep.subr.mxu0 0.0
    %175 = vmatpush1.msra.mxu0 0.0
    %176 = vmatprep.subr.mxu0 0.0
    %177 = vmatpush1.msra.mxu0 0.0
    %178 = vmatprep.subr.mxu0 0.0
    %179 = vmatpush1.msra.mxu0 0.0
    %180 = vmatprep.subr.mxu0 0.0
    %181 = vmatpush1.msra.mxu0 %v119
    %182 = vmatprep.subr.mxu0 0.0
    %183 = vmatpush1.msra.mxu0 %v118
    %184 = vmatprep.subr.mxu0 0.0
    %185 = vmatpush1.msra.mxu0 %v117
    %186 = vmatprep.subr.mxu0 0.0
    %187 = vmatpush1.msra.mxu0 %v116
    %188 = vmatprep.subr.mxu0 0.0
    %189 = vmatpush2.msra.mxu0 0.0
    %190 = vmatprep.subr.mxu0 0.0
    %191 = vmatpush2.msra.mxu0 0.0
    %192 = vmatprep.subr.mxu0 0.0
    %193 = vmatpush2.msra.mxu0 0.0
    %194 = vmatprep.subr.mxu0 0.0
    %195 = vmatpush2.msra.mxu0 0.0
    %196 = vmatprep.subr.mxu0 0.0
    %197 = vmatpush2.msra.mxu0 0.0
    %198 = vmatprep.subr.mxu0 0.0
    %199 = vmatpush2.msra.mxu0 0.0
    %200 = vmatprep.subr.mxu0 0.0
    %201 = vmatpush2.msra.mxu0 0.0
    %202 = vmatprep.subr.mxu0 0.0
    %203 = vmatpush2.msra.mxu0 0.0
    %204 = vmatprep.subr.mxu0 0.0
    %205 = vmatpush2.msra.mxu0 0.0
    %206 = vmatprep.subr.mxu0 0.0
    %207 = vmatpush2.msra.mxu0 0.0
    %208 = vmatprep.subr.mxu0 0.0
    %209 = vmatpush2.msra.mxu0 0.0
    %210 = vmatprep.subr.mxu0 0.0
    %211 = vmatpush2.msra.mxu0 0.0
    %212 = vmatprep.subr.mxu0 0.0
    %213 = vmatpush2.msra.mxu0 0.0
    %214 = vmatprep.subr.mxu0 0.0
    %215 = vmatpush2.msra.mxu0 0.0
    %216 = vmatprep.subr.mxu0 0.0
    %217 = vmatpush2.msra.mxu0 0.0
    %218 = vmatprep.subr.mxu0 0.0
    %219 = vmatpush2.msra.mxu0 0.0
    %220 = vmatprep.mubr.f32.mxu0 0.0
    %221 = vmatmul.mubr.f32.gmra.mxu0 %v154
    %v222 = vpop.f32.mrf.mxu0
    %v223 = vadd.f32 0.0, %v222
    %v224 = vpop.f32.mrf.mxu0
    %225 = vdwg.mxu0
    %vm226 = vcmask 254976
    %227 = vst.msk [vmem:[#allocation2] sm:$0x3] %vm226, %v223
    // Predicated region
    $region14: #{ssi_ddi_block.7} parent=1 // pred_check
      _
    $region15: #{ssi_ddi_block.7} parent=1 // pred_check_branch
      %229 = sbr.rel (0) target = $region17
    $region16: #{ssi_ddi_block.7} parent=1 // pred_region
      %s231 = ssub.s32 32, 32
      %232 = vsyncadd [#allocation3], %s231
      %s234 = sshll.u32 [#allocation2], 4
      %s235 = int_to_ptr.vmem [resolvable:$true] %s234
      %237 = dma.vmem_to_hbm [thread:$0]  %s235, 32, %s3, [#allocation3]
    $region17: #{ssi_ddi_block.7} parent=1 // pred_fallthru
      _
    // Predicated region
    $region18: #{ssi_ddi_block.7} parent=1 // pred_check
      _
    $region19: #{ssi_ddi_block.7} parent=1 // pred_check_branch
      %239 = sbr.rel (0) target = $region21
    $region20: #{ssi_ddi_block.7} parent=1 // pred_region
      %240 = dma.done [#allocation3], 32
    $region21: #{ssi_ddi_block.7} parent=1 // pred_fallthru
      _
    %241 = vsyncpa [#allocation3], 1

</llo_original>
